<compile_context>
chip_gen: v5e
topology: v5e:2x2
jax: 0.10.0
libtpu: 0.0.40
codegen_flags: <defaults>
</compile_context>

<pallas_src>
import jax
import jax.numpy as jnp
from jax import lax
from jax.experimental import pallas as pl
from jax.experimental.pallas import tpu as pltpu

BN_EPS = 1e-5
_CO_CHUNK = 64  # C_out sub-block per dot->affine->store step inside the kernel


def _make_norm_kernel(tile_b, c_out, co_chunk=_CO_CHUNK):
    """Builds the kernel computing out[b] = w_scaled @ x[b] + shift per (image, chunk)."""
    n_chunks = -(-c_out // co_chunk)

    def kernel(x_ref, w_ref, shift_ref, o_ref):
        # x_ref:     (TB, C_in, TM)   spatial axis = lanes (lane-dense)
        # w_ref:     (C_out, C_in)    conv weight with BN scale folded in
        # shift_ref: (C_out, 1)       BN shift  (beta - mean*scale)
        # o_ref:     (TB, C_out, TM)  channel-major output tile
        for b in range(tile_b):
            xb = x_ref[b]                                        # (C_in, TM)
            for i in range(n_chunks):
                c0 = i * co_chunk
                c1 = min(c_out, c0 + co_chunk)
                y = jnp.dot(w_ref[c0:c1, :], xb,
                            preferred_element_type=jnp.float32)  # (chunk, TM)
                o_ref[b, c0:c1, :] = (y + shift_ref[c0:c1, :]).astype(o_ref.dtype)

    return kernel


def _choose_tiling(N, HW, C_out, itemsize):
    """Generation-aware spatial/batch tiling + scoped-VMEM limit."""
    try:
        vmem_cap = int(pltpu.get_tpu_info().vmem_capacity_bytes)
    except Exception:
        vmem_cap = 64 * 1024 * 1024  # conservative fallback
    if vmem_cap >= 96 * 1024 * 1024:          # 128 MiB VMEM class (v5e / v6e)
        max_tile_m, target_out_bytes, vmem_limit = 8192, 8 << 20, 64 << 20
    else:                                     # 64 MiB VMEM class (v7x)
        max_tile_m, target_out_bytes, vmem_limit = 4096, 4 << 20, 48 << 20

    if HW <= max_tile_m:
        # Full spatial extent per block; pack several images per step when HW is small so
        # output blocks stay large and lane-dense.
        tile_m = HW
        per_image_out = max(C_out * HW * itemsize, 1)
        tile_b = int(max(1, min(N, 8, target_out_bytes // per_image_out)))
    else:
        # Multiple of 128; ragged last tile handled by cdiv grid + Pallas OOB masking.
        tile_m = max_tile_m
        tile_b = 1
    grid = (pl.cdiv(N, tile_b), pl.cdiv(HW, tile_m))
    return tile_b, tile_m, grid, vmem_limit


@jax.jit
def class_block_forward(x_nchw, conv_w, bn_gamma, bn_beta):
    """x_nchw: (N, C_in, H, W); conv_w: (C_out, C_in). Returns squeezed NCHW output."""
    N, C_in, H, W = x_nchw.shape
    C_out = conv_w.shape[0]
    HW = H * W

    # Free view: NCHW is already channel-major with spatial contiguous -> (N, C_in, H*W).
    x3 = x_nchw.reshape(N, C_in, HW)

    # ---- BN batch statistics from the tiny C_in moments of x (plain XLA, per review) ----
    m_total = jnp.float32(N * HW)
    w_f32 = conv_w.astype(jnp.float32)
    s = jnp.sum(x3, axis=(0, 2), dtype=jnp.float32)                           # (C_in,)
    gram = jnp.einsum('ncm,ndm->cd', x3, x3,
                      preferred_element_type=jnp.float32)                     # (C_in, C_in)
    mean_x = s / m_total
    cov_x = gram / m_total - jnp.outer(mean_x, mean_x)
    mean_y = w_f32 @ mean_x                                                    # (C_out,)
    var_y = jnp.maximum(jnp.sum((w_f32 @ cov_x) * w_f32, axis=1), 0.0)         # (C_out,)
    inv_std = lax.rsqrt(var_y + BN_EPS)
    scale = bn_gamma.astype(jnp.float32) * inv_std
    w_scaled = w_f32 * scale[:, None]                        # BN scale folded into weight
    shift = (bn_beta.astype(jnp.float32) - mean_y * scale).reshape(C_out, 1)
    # TODO(synk): running_mean / running_var buffer updates are not modeled (they do not
    # affect the forward output of this module).

    # ---- single Pallas sweep: out = w_scaled @ x + shift, streamed at HBM roofline ------
    itemsize = jnp.dtype(x_nchw.dtype).itemsize
    tile_b, tile_m, grid, vmem_limit = _choose_tiling(N, HW, C_out, itemsize)

    out3 = pl.pallas_call(
        _make_norm_kernel(tile_b, C_out),
        out_shape=jax.ShapeDtypeStruct((N, C_out, HW), x_nchw.dtype),
        grid_spec=pltpu.PrefetchScalarGridSpec(
            num_scalar_prefetch=0,
            grid=grid,
            in_specs=[
                pl.BlockSpec((tile_b, C_in, tile_m), lambda b, m: (b, 0, m)),
                pl.BlockSpec((C_out, C_in), lambda b, m: (0, 0)),
                pl.BlockSpec((C_out, 1), lambda b, m: (0, 0)),
            ],
            out_specs=pl.BlockSpec((tile_b, C_out, tile_m), lambda b, m: (b, 0, m)),
        ),
        compiler_params=pltpu.CompilerParams(
            dimension_semantics=("parallel", "parallel"),
            vmem_limit_bytes=vmem_limit),
    )(x3, w_scaled, shift)

    # (N, C_out, HW) -> (N, C_out, H, W) is a free reshape (no HBM transpose pass),
    # then torch.squeeze semantics.
    return jnp.squeeze(out3.reshape(N, C_out, H, W))


def init_params(key, input_dim, num_features):
    # Conv2d weight: kaiming_normal_(a=0, mode='fan_in'), fan_in = input_dim*1*1
    std = (2.0 / float(input_dim)) ** 0.5
    conv_w = std * jax.random.normal(key, (num_features, input_dim), dtype=jnp.float32)
    # BatchNorm2d affine params per weights_init_kaiming: weight=1, bias=0
    bn_gamma = jnp.ones((num_features,), dtype=jnp.float32)
    bn_beta = jnp.zeros((num_features,), dtype=jnp.float32)
    return conv_w, bn_gamma, bn_beta


def reference_forward(x_nchw, conv_w, bn_gamma, bn_beta):
    N, C_in, H, W = x_nchw.shape
    C_out = conv_w.shape[0]
    x_mat = jnp.transpose(x_nchw, (0, 2, 3, 1)).reshape(-1, C_in)
    y = x_mat @ conv_w.T
    mean = jnp.mean(y, axis=0, keepdims=True)
    var = jnp.mean((y - mean) ** 2, axis=0, keepdims=True)
    y = (y - mean) / jnp.sqrt(var + BN_EPS) * bn_gamma + bn_beta
    out = y.reshape(N, H, W, C_out).transpose(0, 3, 1, 2)
    return jnp.squeeze(out)


if __name__ == "__main__":
    key = jax.random.PRNGKey(0)
    k_x, k_w = jax.random.split(key)

    # Small shapes consistent with the module: NCHW input, input_dim=4, num_features=256
    N, C_in, H, W = 2, 4, 16, 16
    num_features = 256

    x = jax.random.normal(k_x, (N, C_in, H, W), dtype=jnp.float32)
    conv_w, bn_gamma, bn_beta = init_params(k_w, C_in, num_features)

    out = jax.block_until_ready(class_block_forward(x, conv_w, bn_gamma, bn_beta))

    ref = reference_forward(x, conv_w, bn_gamma, bn_beta)
    assert out.shape == ref.shape, (out.shape, ref.shape)
    assert jnp.allclose(out, ref, atol=1e-4, rtol=1e-4), float(jnp.max(jnp.abs(out - ref)))

    print("KERNEL_OK")
</pallas_src>

<mosaic_0001>
module attributes {stable_mosaic.version = 11 : i64} {
  func.func @kernel(%arg0: i32, %arg1: i32, %arg2: memref<2x4x256xf32, #tpu.memory_space<vmem>>, %arg3: memref<256x4xf32, #tpu.memory_space<vmem>>, %arg4: memref<256x1xf32, #tpu.memory_space<vmem>>, %arg5: memref<2x256x256xf32, #tpu.memory_space<vmem>>) attributes {dimension_semantics = [#tpu.dimension_semantics<parallel>, #tpu.dimension_semantics<parallel>], iteration_bounds = array<i64: 1, 1>, scalar_prefetch = 0 : i64, scratch_operands = 0 : i64, tpu.core_type = #tpu.core_type<tc>, window_params = [{transform_indices = @transform_0, window_bounds = array<i64: 2, 4, 256>}, {pipeline_mode = #tpu.pipeline_mode<synchronous>, transform_indices = @transform_1, window_bounds = array<i64: 256, 4>}, {pipeline_mode = #tpu.pipeline_mode<synchronous>, transform_indices = @transform_2, window_bounds = array<i64: 256, 1>}, {transform_indices = @transform_3, window_bounds = array<i64: 2, 256, 256>}]} {
    %c0 = arith.constant 0 : index
    %c0_0 = arith.constant 0 : index
    %c0_1 = arith.constant 0 : index
    %0 = vector.load %arg2[%c0, %c0_0, %c0_1] : memref<2x4x256xf32, #tpu.memory_space<vmem>>, vector<1x4x256xf32>
    %1 = vector.shape_cast %0 : vector<1x4x256xf32> to vector<4x256xf32>
    %c0_2 = arith.constant 0 : index
    %c0_3 = arith.constant 0 : index
    %2 = vector.load %arg3[%c0_2, %c0_3] : memref<256x4xf32, #tpu.memory_space<vmem>>, vector<64x4xf32>
    %cst = arith.constant dense<0.000000e+00> : vector<64x256xf32>
    %3 = tpu.matmul %2, %1, %cst {dimension_numbers = #tpu.dot_dimension_numbers<[1], [0], [0], [1], [0, 0, 1, 1], [], []>} : vector<64x4xf32>, vector<4x256xf32>, vector<64x256xf32> -> vector<64x256xf32>
    %c0_4 = arith.constant 0 : index
    %c0_5 = arith.constant 0 : index
    %4 = vector.load %arg4[%c0_4, %c0_5] : memref<256x1xf32, #tpu.memory_space<vmem>>, vector<64x1xf32>
    %5 = vector.broadcast %4 : vector<64x1xf32> to vector<64x256xf32>
    %6 = arith.addf %3, %5 : vector<64x256xf32>
    %c0_6 = arith.constant 0 : index
    %c0_7 = arith.constant 0 : index
    %c0_8 = arith.constant 0 : index
    %7 = vector.load %arg5[%c0_6, %c0_7, %c0_8] : memref<2x256x256xf32, #tpu.memory_space<vmem>>, vector<1x64x256xf32>
    %8 = vector.shape_cast %7 : vector<1x64x256xf32> to vector<64x256xf32>
    %9 = vector.shape_cast %6 : vector<64x256xf32> to vector<1x64x256xf32>
    tpu.vector_store %arg5[%c0_6, %c0_7, %c0_8], %9 {strides = array<i32>} : memref<2x256x256xf32, #tpu.memory_space<vmem>>, vector<1x64x256xf32>,
    %c64 = arith.constant 64 : index
    %c0_9 = arith.constant 0 : index
    %10 = vector.load %arg3[%c64, %c0_9] : memref<256x4xf32, #tpu.memory_space<vmem>>, vector<64x4xf32>
    %cst_10 = arith.constant dense<0.000000e+00> : vector<64x256xf32>
    %11 = tpu.matmul %10, %1, %cst_10 {dimension_numbers = #tpu.dot_dimension_numbers<[1], [0], [0], [1], [0, 0, 1, 1], [], []>} : vector<64x4xf32>, vector<4x256xf32>, vector<64x256xf32> -> vector<64x256xf32>
    %c64_11 = arith.constant 64 : index
    %c0_12 = arith.constant 0 : index
    %12 = vector.load %arg4[%c64_11, %c0_12] : memref<256x1xf32, #tpu.memory_space<vmem>>, vector<64x1xf32>
    %13 = vector.broadcast %12 : vector<64x1xf32> to vector<64x256xf32>
    %14 = arith.addf %11, %13 : vector<64x256xf32>
    %c0_13 = arith.constant 0 : index
    %c64_14 = arith.constant 64 : index
    %c0_15 = arith.constant 0 : index
    %15 = vector.load %arg5[%c0_13, %c64_14, %c0_15] : memref<2x256x256xf32, #tpu.memory_space<vmem>>, vector<1x64x256xf32>
    %16 = vector.shape_cast %15 : vector<1x64x256xf32> to vector<64x256xf32>
    %17 = vector.shape_cast %14 : vector<64x256xf32> to vector<1x64x256xf32>
    tpu.vector_store %arg5[%c0_13, %c64_14, %c0_15], %17 {strides = array<i32>} : memref<2x256x256xf32, #tpu.memory_space<vmem>>, vector<1x64x256xf32>,
    %c128 = arith.constant 128 : index
    %c0_16 = arith.constant 0 : index
    %18 = vector.load %arg3[%c128, %c0_16] : memref<256x4xf32, #tpu.memory_space<vmem>>, vector<64x4xf32>
    %cst_17 = arith.constant dense<0.000000e+00> : vector<64x256xf32>
    %19 = tpu.matmul %18, %1, %cst_17 {dimension_numbers = #tpu.dot_dimension_numbers<[1], [0], [0], [1], [0, 0, 1, 1], [], []>} : vector<64x4xf32>, vector<4x256xf32>, vector<64x256xf32> -> vector<64x256xf32>
    %c128_18 = arith.constant 128 : index
    %c0_19 = arith.constant 0 : index
    %20 = vector.load %arg4[%c128_18, %c0_19] : memref<256x1xf32, #tpu.memory_space<vmem>>, vector<64x1xf32>
    %21 = vector.broadcast %20 : vector<64x1xf32> to vector<64x256xf32>
    %22 = arith.addf %19, %21 : vector<64x256xf32>
    %c0_20 = arith.constant 0 : index
    %c128_21 = arith.constant 128 : index
    %c0_22 = arith.constant 0 : index
    %23 = vector.load %arg5[%c0_20, %c128_21, %c0_22] : memref<2x256x256xf32, #tpu.memory_space<vmem>>, vector<1x64x256xf32>
    %24 = vector.shape_cast %23 : vector<1x64x256xf32> to vector<64x256xf32>
    %25 = vector.shape_cast %22 : vector<64x256xf32> to vector<1x64x256xf32>
    tpu.vector_store %arg5[%c0_20, %c128_21, %c0_22], %25 {strides = array<i32>} : memref<2x256x256xf32, #tpu.memory_space<vmem>>, vector<1x64x256xf32>,
    %c192 = arith.constant 192 : index
    %c0_23 = arith.constant 0 : index
    %26 = vector.load %arg3[%c192, %c0_23] : memref<256x4xf32, #tpu.memory_space<vmem>>, vector<64x4xf32>
    %cst_24 = arith.constant dense<0.000000e+00> : vector<64x256xf32>
    %27 = tpu.matmul %26, %1, %cst_24 {dimension_numbers = #tpu.dot_dimension_numbers<[1], [0], [0], [1], [0, 0, 1, 1], [], []>} : vector<64x4xf32>, vector<4x256xf32>, vector<64x256xf32> -> vector<64x256xf32>
    %c192_25 = arith.constant 192 : index
    %c0_26 = arith.constant 0 : index
    %28 = vector.load %arg4[%c192_25, %c0_26] : memref<256x1xf32, #tpu.memory_space<vmem>>, vector<64x1xf32>
    %29 = vector.broadcast %28 : vector<64x1xf32> to vector<64x256xf32>
    %30 = arith.addf %27, %29 : vector<64x256xf32>
    %c0_27 = arith.constant 0 : index
    %c192_28 = arith.constant 192 : index
    %c0_29 = arith.constant 0 : index
    %31 = vector.load %arg5[%c0_27, %c192_28, %c0_29] : memref<2x256x256xf32, #tpu.memory_space<vmem>>, vector<1x64x256xf32>
    %32 = vector.shape_cast %31 : vector<1x64x256xf32> to vector<64x256xf32>
    %33 = vector.shape_cast %30 : vector<64x256xf32> to vector<1x64x256xf32>
    tpu.vector_store %arg5[%c0_27, %c192_28, %c0_29], %33 {strides = array<i32>} : memref<2x256x256xf32, #tpu.memory_space<vmem>>, vector<1x64x256xf32>,
    %c1 = arith.constant 1 : index
    %c0_30 = arith.constant 0 : index
    %c0_31 = arith.constant 0 : index
    %34 = vector.load %arg2[%c1, %c0_30, %c0_31] : memref<2x4x256xf32, #tpu.memory_space<vmem>>, vector<1x4x256xf32>
    %35 = vector.shape_cast %34 : vector<1x4x256xf32> to vector<4x256xf32>
    %c0_32 = arith.constant 0 : index
    %c0_33 = arith.constant 0 : index
    %36 = vector.load %arg3[%c0_32, %c0_33] : memref<256x4xf32, #tpu.memory_space<vmem>>, vector<64x4xf32>
    %cst_34 = arith.constant dense<0.000000e+00> : vector<64x256xf32>
    %37 = tpu.matmul %36, %35, %cst_34 {dimension_numbers = #tpu.dot_dimension_numbers<[1], [0], [0], [1], [0, 0, 1, 1], [], []>} : vector<64x4xf32>, vector<4x256xf32>, vector<64x256xf32> -> vector<64x256xf32>
    %c0_35 = arith.constant 0 : index
    %c0_36 = arith.constant 0 : index
    %38 = vector.load %arg4[%c0_35, %c0_36] : memref<256x1xf32, #tpu.memory_space<vmem>>, vector<64x1xf32>
    %39 = vector.broadcast %38 : vector<64x1xf32> to vector<64x256xf32>
    %40 = arith.addf %37, %39 : vector<64x256xf32>
    %c1_37 = arith.constant 1 : index
    %c0_38 = arith.constant 0 : index
    %c0_39 = arith.constant 0 : index
    %41 = vector.load %arg5[%c1_37, %c0_38, %c0_39] : memref<2x256x256xf32, #tpu.memory_space<vmem>>, vector<1x64x256xf32>
    %42 = vector.shape_cast %41 : vector<1x64x256xf32> to vector<64x256xf32>
    %43 = vector.shape_cast %40 : vector<64x256xf32> to vector<1x64x256xf32>
    tpu.vector_store %arg5[%c1_37, %c0_38, %c0_39], %43 {strides = array<i32>} : memref<2x256x256xf32, #tpu.memory_space<vmem>>, vector<1x64x256xf32>,
    %c64_40 = arith.constant 64 : index
    %c0_41 = arith.constant 0 : index
    %44 = vector.load %arg3[%c64_40, %c0_41] : memref<256x4xf32, #tpu.memory_space<vmem>>, vector<64x4xf32>
    %cst_42 = arith.constant dense<0.000000e+00> : vector<64x256xf32>
    %45 = tpu.matmul %44, %35, %cst_42 {dimension_numbers = #tpu.dot_dimension_numbers<[1], [0], [0], [1], [0, 0, 1, 1], [], []>} : vector<64x4xf32>, vector<4x256xf32>, vector<64x256xf32> -> vector<64x256xf32>
    %c64_43 = arith.constant 64 : index
    %c0_44 = arith.constant 0 : index
    %46 = vector.load %arg4[%c64_43, %c0_44] : memref<256x1xf32, #tpu.memory_space<vmem>>, vector<64x1xf32>
    %47 = vector.broadcast %46 : vector<64x1xf32> to vector<64x256xf32>
    %48 = arith.addf %45, %47 : vector<64x256xf32>
    %c1_45 = arith.constant 1 : index
    %c64_46 = arith.constant 64 : index
    %c0_47 = arith.constant 0 : index
    %49 = vector.load %arg5[%c1_45, %c64_46, %c0_47] : memref<2x256x256xf32, #tpu.memory_space<vmem>>, vector<1x64x256xf32>
    %50 = vector.shape_cast %49 : vector<1x64x256xf32> to vector<64x256xf32>
    %51 = vector.shape_cast %48 : vector<64x256xf32> to vector<1x64x256xf32>
    tpu.vector_store %arg5[%c1_45, %c64_46, %c0_47], %51 {strides = array<i32>} : memref<2x256x256xf32, #tpu.memory_space<vmem>>, vector<1x64x256xf32>,
    %c128_48 = arith.constant 128 : index
    %c0_49 = arith.constant 0 : index
    %52 = vector.load %arg3[%c128_48, %c0_49] : memref<256x4xf32, #tpu.memory_space<vmem>>, vector<64x4xf32>
    %cst_50 = arith.constant dense<0.000000e+00> : vector<64x256xf32>
    %53 = tpu.matmul %52, %35, %cst_50 {dimension_numbers = #tpu.dot_dimension_numbers<[1], [0], [0], [1], [0, 0, 1, 1], [], []>} : vector<64x4xf32>, vector<4x256xf32>, vector<64x256xf32> -> vector<64x256xf32>
    %c128_51 = arith.constant 128 : index
    %c0_52 = arith.constant 0 : index
    %54 = vector.load %arg4[%c128_51, %c0_52] : memref<256x1xf32, #tpu.memory_space<vmem>>, vector<64x1xf32>
    %55 = vector.broadcast %54 : vector<64x1xf32> to vector<64x256xf32>
    %56 = arith.addf %53, %55 : vector<64x256xf32>
    %c1_53 = arith.constant 1 : index
    %c128_54 = arith.constant 128 : index
    %c0_55 = arith.constant 0 : index
    %57 = vector.load %arg5[%c1_53, %c128_54, %c0_55] : memref<2x256x256xf32, #tpu.memory_space<vmem>>, vector<1x64x256xf32>
    %58 = vector.shape_cast %57 : vector<1x64x256xf32> to vector<64x256xf32>
    %59 = vector.shape_cast %56 : vector<64x256xf32> to vector<1x64x256xf32>
    tpu.vector_store %arg5[%c1_53, %c128_54, %c0_55], %59 {strides = array<i32>} : memref<2x256x256xf32, #tpu.memory_space<vmem>>, vector<1x64x256xf32>,
    %c192_56 = arith.constant 192 : index
    %c0_57 = arith.constant 0 : index
    %60 = vector.load %arg3[%c192_56, %c0_57] : memref<256x4xf32, #tpu.memory_space<vmem>>, vector<64x4xf32>
    %cst_58 = arith.constant dense<0.000000e+00> : vector<64x256xf32>
    %61 = tpu.matmul %60, %35, %cst_58 {dimension_numbers = #tpu.dot_dimension_numbers<[1], [0], [0], [1], [0, 0, 1, 1], [], []>} : vector<64x4xf32>, vector<4x256xf32>, vector<64x256xf32> -> vector<64x256xf32>
    %c192_59 = arith.constant 192 : index
    %c0_60 = arith.constant 0 : index
    %62 = vector.load %arg4[%c192_59, %c0_60] : memref<256x1xf32, #tpu.memory_space<vmem>>, vector<64x1xf32>
    %63 = vector.broadcast %62 : vector<64x1xf32> to vector<64x256xf32>
    %64 = arith.addf %61, %63 : vector<64x256xf32>
    %c1_61 = arith.constant 1 : index
    %c192_62 = arith.constant 192 : index
    %c0_63 = arith.constant 0 : index
    %65 = vector.load %arg5[%c1_61, %c192_62, %c0_63] : memref<2x256x256xf32, #tpu.memory_space<vmem>>, vector<1x64x256xf32>
    %66 = vector.shape_cast %65 : vector<1x64x256xf32> to vector<64x256xf32>
    %67 = vector.shape_cast %64 : vector<64x256xf32> to vector<1x64x256xf32>
    tpu.vector_store %arg5[%c1_61, %c192_62, %c0_63], %67 {strides = array<i32>} : memref<2x256x256xf32, #tpu.memory_space<vmem>>, vector<1x64x256xf32>,
    return
  }
  func.func @transform_0(%arg0: i32, %arg1: i32) -> (i32, i32, i32) {
    %c0_i32 = arith.constant 0 : i32
    %c0_i32_0 = arith.constant 0 : i32
    return %arg0, %c0_i32, %arg1 : i32, i32, i32
  }
  func.func @transform_1(%arg0: i32, %arg1: i32) -> (i32, i32) {
    %c0_i32 = arith.constant 0 : i32
    %c0_i32_0 = arith.constant 0 : i32
    %c0_i32_1 = arith.constant 0 : i32
    return %c0_i32, %c0_i32_0 : i32, i32
  }
  func.func @transform_2(%arg0: i32, %arg1: i32) -> (i32, i32) {
    %c0_i32 = arith.constant 0 : i32
    %c0_i32_0 = arith.constant 0 : i32
    %c0_i32_1 = arith.constant 0 : i32
    return %c0_i32, %c0_i32_0 : i32, i32
  }
  func.func @transform_3(%arg0: i32, %arg1: i32) -> (i32, i32, i32) {
    %c0_i32 = arith.constant 0 : i32
    %c0_i32_0 = arith.constant 0 : i32
    return %arg0, %c0_i32, %arg1 : i32, i32, i32
  }
}

</mosaic_0001>

<llo_original>
// kernel: class_block_forward.1
$region0: #{class_block_forward.1}
  #allocation0 [shape = 'u32[]', space=smem, size = 0x4, offset = 0x4, fixed_abs, tag = 'smem constant byte address 0x4 - core index']
  #allocation1 [shape = 'u32[72,128]{1,0:T(1,128)}', space=vmem, size = 0x9000, scoped, tag = 'internal scratch']
  %s0 = inlined_call_operand.vmem [shape: f32[2,4,256], index: 0, kind: input, shape index: {}]
  %s1 = inlined_call_operand.vmem [shape: f32[256,4], index: 1, kind: input, shape index: {}]
  %s2 = inlined_call_operand.vmem [shape: f32[256,1], index: 2, kind: input, shape index: {}]
  %s3 = inlined_call_operand.vmem [shape: f32[2,256,256], index: 3, kind: output, shape index: {}]
  %s4 = sld [smem:[#allocation0]]
  $region22: #{class_block_forward.1} parent=0
    _
  %s6 = ssub.s32 1, %s4
  %s7 = scalar_select 0, %s6, %s4
  // Predicated region
  $region2: #{class_block_forward.1} parent=0 // pred_check
    _
  $region3: #{class_block_forward.1} parent=0 // pred_check_branch
    %9 = sbr.rel (0) target = $region5
  $region4: #{class_block_forward.1} parent=0 // pred_region
    _
  $region5: #{class_block_forward.1} parent=0 // pred_fallthru
    _
  // Predicated region
  $region6: #{class_block_forward.1} parent=0 // pred_check
    _
  $region7: #{class_block_forward.1} parent=0 // pred_check_branch
    %11 = sbr.rel (0) target = $region9
  $region8: #{class_block_forward.1} parent=0 // pred_region
    _
  $region9: #{class_block_forward.1} parent=0 // pred_fallthru
    _
  // Predicated region
  $region10: #{class_block_forward.1} parent=0 // pred_check
    _
  $region11: #{class_block_forward.1} parent=0 // pred_check_branch
    %13 = sbr.rel (0) target = $region13
  $region12: #{class_block_forward.1} parent=0 // pred_region
    _
  $region13: #{class_block_forward.1} parent=0 // pred_fallthru
    _
  %v14 = vld [vmem:[%s0] sm:$0xff]
  %v15 = vld [vmem:[%s1] sm:$0xff]
  %v16 = vld [vmem:[%s1 + $0x8] sm:$0xff]
  %v17 = vld [vmem:[%s1 + $0x10] sm:$0xff]
  %v18 = vld [vmem:[%s1 + $0x18] sm:$0xff]
  %v19 = vld [vmem:[%s1 + $0x20] sm:$0xff]
  %v20 = vld [vmem:[%s1 + $0x28] sm:$0xff]
  %v21 = vld [vmem:[%s1 + $0x30] sm:$0xff]
  %v22 = vld [vmem:[%s1 + $0x38] sm:$0xff]
  %v23 = vld [vmem:[%s2] sm:$0xff]
  %v24 = vld [vmem:[%s2 + $0x8] sm:$0xff]
  %v25 = vld [vmem:[%s2 + $0x10] sm:$0xff]
  %v26 = vld [vmem:[%s2 + $0x18] sm:$0xff]
  %v27 = vld [vmem:[%s2 + $0x20] sm:$0xff]
  %v28 = vld [vmem:[%s2 + $0x28] sm:$0xff]
  %v29 = vld [vmem:[%s2 + $0x30] sm:$0xff]
  %v30 = vld [vmem:[%s2 + $0x38] sm:$0xff]
  %32 = vset.pattern.permute.xlu0 0
  %33 = vperm.xlu0 %32, %v23
  %v34 = vpop.permute.xlu0 %33
  %37 = vset.pattern.permute.xlu0 0
  %38 = vperm.xlu0 %37, %v24
  %v39 = vpop.permute.xlu0 %38
  %42 = vset.pattern.permute.xlu0 0
  %43 = vperm.xlu0 %42, %v25
  %v44 = vpop.permute.xlu0 %43
  %47 = vset.pattern.permute.xlu0 0
  %48 = vperm.xlu0 %47, %v26
  %v49 = vpop.permute.xlu0 %48
  %52 = vset.pattern.permute.xlu0 0
  %53 = vperm.xlu0 %52, %v27
  %v54 = vpop.permute.xlu0 %53
  %57 = vset.pattern.permute.xlu0 0
  %58 = vperm.xlu0 %57, %v28
  %v59 = vpop.permute.xlu0 %58
  %62 = vset.pattern.permute.xlu0 0
  %63 = vperm.xlu0 %62, %v29
  %v64 = vpop.permute.xlu0 %63
  %67 = vset.pattern.permute.xlu0 0
  %68 = vperm.xlu0 %67, %v30
  %v69 = vpop.permute.xlu0 %68
  %72 = vst [vmem:[#allocation1] ss:$2 sm:$0xff] %v14
  %v73 = vld.sshfl [vmem:[#allocation1] sm:$0xff pattern:$0x75316420]
  %v74 = vld.sshfl [vmem:[#allocation1 + $0x8] sm:$0xff pattern:$0x75316420]
  %vm75 = vcmask 31744
  %v77 = vsel %vm75, %v15, 0
  %v80 = vsel %vm75, %v16, 0
  %v83 = vsel %vm75, %v17, 0
  %v86 = vsel %vm75, %v18, 0
  %v89 = vsel %vm75, %v19, 0
  %v92 = vsel %vm75, %v20, 0
  %v95 = vsel %vm75, %v21, 0
  %v98 = vsel %vm75, %v22, 0
  %vm100 = vcmask 1043456
  %v101 = vsel %vm100, %v73, 0
  %v103 = vsel %vm100, %v74, 0
  %105 = vmatpush.msra.mxu0 0.0
  %106 = vmatpush.msra.mxu0 0.0
  %107 = vmatpush.msra.mxu0 0.0
  %108 = vmatpush.msra.mxu0 0.0
  %109 = vmatpush.msra.mxu0 0.0
  %110 = vmatpush.msra.mxu0 0.0
  %111 = vmatpush.msra.mxu0 0.0
  %112 = vmatpush.msra.mxu0 0.0
  %113 = vmatpush.msra.mxu0 0.0
  %114 = vmatpush.msra.mxu0 0.0
  %115 = vmatpush.msra.mxu0 0.0
  %116 = vmatpush.msra.mxu0 0.0
  %117 = vmatpush.msra.mxu0 0.0
  %118 = vmatpush.msra.mxu0 0.0
  %119 = vmatpush.msra.mxu0 0.0
  %120 = vmatpush.msra.mxu0 %v101
  %121 = vmatmul.f32.gmra.mxu0 %v77
  %v122 = vpop.f32.mrf.mxu0
  %v123 = vadd.f32 %v34, %v122
  %124 = vmatmul.f32.gmra.mxu0 %v80
  %v125 = vpop.f32.mrf.mxu0
  %v126 = vadd.f32 %v39, %v125
  %127 = vmatmul.f32.gmra.mxu0 %v83
  %v128 = vpop.f32.mrf.mxu0
  %v129 = vadd.f32 %v44, %v128
  %130 = vmatmul.f32.gmra.mxu0 %v86
  %v131 = vpop.f32.mrf.mxu0
  %v132 = vadd.f32 %v49, %v131
  %133 = vmatmul.f32.gmra.mxu0 %v89
  %v134 = vpop.f32.mrf.mxu0
  %v135 = vadd.f32 %v54, %v134
  %136 = vmatmul.f32.gmra.mxu0 %v92
  %v137 = vpop.f32.mrf.mxu0
  %v138 = vadd.f32 %v59, %v137
  %139 = vmatmul.f32.gmra.mxu0 %v95
  %v140 = vpop.f32.mrf.mxu0
  %v141 = vadd.f32 %v64, %v140
  %142 = vmatmul.f32.gmra.mxu0 %v98
  %v143 = vpop.f32.mrf.mxu0
  %v144 = vadd.f32 %v69, %v143
  %145 = vdwg.mxu0
  %146 = vmatpush.msra.mxu0 0.0
  %147 = vmatpush.msra.mxu0 0.0
  %148 = vmatpush.msra.mxu0 0.0
  %149 = vmatpush.msra.mxu0 0.0
  %150 = vmatpush.msra.mxu0 0.0
  %151 = vmatpush.msra.mxu0 0.0
  %152 = vmatpush.msra.mxu0 0.0
  %153 = vmatpush.msra.mxu0 0.0
  %154 = vmatpush.msra.mxu0 0.0
  %155 = vmatpush.msra.mxu0 0.0
  %156 = vmatpush.msra.mxu0 0.0
  %157 = vmatpush.msra.mxu0 0.0
  %158 = vmatpush.msra.mxu0 0.0
  %159 = vmatpush.msra.mxu0 0.0
  %160 = vmatpush.msra.mxu0 0.0
  %161 = vmatpush.msra.mxu0 %v103
  %162 = vmatmul.f32.gmra.mxu0 %v77
  %v163 = vpop.f32.mrf.mxu0
  %v164 = vadd.f32 %v34, %v163
  %165 = vmatmul.f32.gmra.mxu0 %v80
  %v166 = vpop.f32.mrf.mxu0
  %v167 = vadd.f32 %v39, %v166
  %168 = vmatmul.f32.gmra.mxu0 %v83
  %v169 = vpop.f32.mrf.mxu0
  %v170 = vadd.f32 %v44, %v169
  %171 = vmatmul.f32.gmra.mxu0 %v86
  %v172 = vpop.f32.mrf.mxu0
  %v173 = vadd.f32 %v49, %v172
  %174 = vmatmul.f32.gmra.mxu0 %v89
  %v175 = vpop.f32.mrf.mxu0
  %v176 = vadd.f32 %v54, %v175
  %177 = vmatmul.f32.gmra.mxu0 %v92
  %v178 = vpop.f32.mrf.mxu0
  %v179 = vadd.f32 %v59, %v178
  %180 = vmatmul.f32.gmra.mxu0 %v95
  %v181 = vpop.f32.mrf.mxu0
  %v182 = vadd.f32 %v64, %v181
  %183 = vmatmul.f32.gmra.mxu0 %v98
  %v184 = vpop.f32.mrf.mxu0
  %v185 = vadd.f32 %v69, %v184
  %186 = vdwg.mxu0
  %187 = vst [vmem:[%s3] sm:$0xff] %v123
  %188 = vst [vmem:[%s3 + $0x8] sm:$0xff] %v164
  %189 = vst [vmem:[%s3 + $0x10] sm:$0xff] %v126
  %190 = vst [vmem:[%s3 + $0x18] sm:$0xff] %v167
  %191 = vst [vmem:[%s3 + $0x20] sm:$0xff] %v129
  %192 = vst [vmem:[%s3 + $0x28] sm:$0xff] %v170
  %193 = vst [vmem:[%s3 + $0x30] sm:$0xff] %v132
  %194 = vst [vmem:[%s3 + $0x38] sm:$0xff] %v173
  %195 = vst [vmem:[%s3 + $0x40] sm:$0xff] %v135
  %196 = vst [vmem:[%s3 + $0x48] sm:$0xff] %v176
  %197 = vst [vmem:[%s3 + $0x50] sm:$0xff] %v138
  %198 = vst [vmem:[%s3 + $0x58] sm:$0xff] %v179
  %199 = vst [vmem:[%s3 + $0x60] sm:$0xff] %v141
  %200 = vst [vmem:[%s3 + $0x68] sm:$0xff] %v182
  %201 = vst [vmem:[%s3 + $0x70] sm:$0xff] %v144
  %202 = vst [vmem:[%s3 + $0x78] sm:$0xff] %v185
  %v203 = vld [vmem:[%s1 + $0x40] sm:$0xff]
  %v204 = vld [vmem:[%s1 + $0x48] sm:$0xff]
  %v205 = vld [vmem:[%s1 + $0x50] sm:$0xff]
  %v206 = vld [vmem:[%s1 + $0x58] sm:$0xff]
  %v207 = vld [vmem:[%s1 + $0x60] sm:$0xff]
  %v208 = vld [vmem:[%s1 + $0x68] sm:$0xff]
  %v209 = vld [vmem:[%s1 + $0x70] sm:$0xff]
  %v210 = vld [vmem:[%s1 + $0x78] sm:$0xff]
  %v211 = vld [vmem:[%s2 + $0x40] sm:$0xff]
  %v212 = vld [vmem:[%s2 + $0x48] sm:$0xff]
  %v213 = vld [vmem:[%s2 + $0x50] sm:$0xff]
  %v214 = vld [vmem:[%s2 + $0x58] sm:$0xff]
  %v215 = vld [vmem:[%s2 + $0x60] sm:$0xff]
  %v216 = vld [vmem:[%s2 + $0x68] sm:$0xff]
  %v217 = vld [vmem:[%s2 + $0x70] sm:$0xff]
  %v218 = vld [vmem:[%s2 + $0x78] sm:$0xff]
  %220 = vset.pattern.permute.xlu0 0
  %221 = vperm.xlu0 %220, %v211
  %v222 = vpop.permute.xlu0 %221
  %225 = vset.pattern.permute.xlu0 0
  %226 = vperm.xlu0 %225, %v212
  %v227 = vpop.permute.xlu0 %226
  %230 = vset.pattern.permute.xlu0 0
  %231 = vperm.xlu0 %230, %v213
  %v232 = vpop.permute.xlu0 %231
  %235 = vset.pattern.permute.xlu0 0
  %236 = vperm.xlu0 %235, %v214
  %v237 = vpop.permute.xlu0 %236
  %240 = vset.pattern.permute.xlu0 0
  %241 = vperm.xlu0 %240, %v215
  %v242 = vpop.permute.xlu0 %241
  %245 = vset.pattern.permute.xlu0 0
  %246 = vperm.xlu0 %245, %v216
  %v247 = vpop.permute.xlu0 %246
  %250 = vset.pattern.permute.xlu0 0
  %251 = vperm.xlu0 %250, %v217
  %v252 = vpop.permute.xlu0 %251
  %255 = vset.pattern.permute.xlu0 0
  %256 = vperm.xlu0 %255, %v218
  %v257 = vpop.permute.xlu0 %256
  %259 = vst [vmem:[#allocation1] ss:$2 sm:$0xff] %v14
  %v260 = vld.sshfl [vmem:[#allocation1] sm:$0xff pattern:$0x75316420]
  %v261 = vld.sshfl [vmem:[#allocation1 + $0x8] sm:$0xff pattern:$0x75316420]
  %v263 = vsel %vm75, %v203, 0
  %v266 = vsel %vm75, %v204, 0
  %v269 = vsel %vm75, %v205, 0
  %v272 = vsel %vm75, %v206, 0
  %v275 = vsel %vm75, %v207, 0
  %v278 = vsel %vm75, %v208, 0
  %v281 = vsel %vm75, %v209, 0
  %v284 = vsel %vm75, %v210, 0
  %v286 = vsel %vm100, %v260, 0
  %v288 = vsel %vm100, %v261, 0
  %290 = vmatpush.msra.mxu0 0.0
  %291 = vmatpush.msra.mxu0 0.0
  %292 = vmatpush.msra.mxu0 0.0
  %293 = vmatpush.msra.mxu0 0.0
  %294 = vmatpush.msra.mxu0 0.0
  %295 = vmatpush.msra.mxu0 0.0
  %296 = vmatpush.msra.mxu0 0.0
  %297 = vmatpush.msra.mxu0 0.0
  %298 = vmatpush.msra.mxu0 0.0
  %299 = vmatpush.msra.mxu0 0.0
  %300 = vmatpush.msra.mxu0 0.0
  %301 = vmatpush.msra.mxu0 0.0
  %302 = vmatpush.msra.mxu0 0.0
  %303 = vmatpush.msra.mxu0 0.0
  %304 = vmatpush.msra.mxu0 0.0
  %305 = vmatpush.msra.mxu0 %v286
  %306 = vmatmul.f32.gmra.mxu0 %v263
  %v307 = vpop.f32.mrf.mxu0
  %v308 = vadd.f32 %v222, %v307
  %309 = vmatmul.f32.gmra.mxu0 %v266
  %v310 = vpop.f32.mrf.mxu0
  %v311 = vadd.f32 %v227, %v310
  %312 = vmatmul.f32.gmra.mxu0 %v269
  %v313 = vpop.f32.mrf.mxu0
  %v314 = vadd.f32 %v232, %v313
  %315 = vmatmul.f32.gmra.mxu0 %v272
  %v316 = vpop.f32.mrf.mxu0
  %v317 = vadd.f32 %v237, %v316
  %318 = vmatmul.f32.gmra.mxu0 %v275
  %v319 = vpop.f32.mrf.mxu0
  %v320 = vadd.f32 %v242, %v319
  %321 = vmatmul.f32.gmra.mxu0 %v278
  %v322 = vpop.f32.mrf.mxu0
  %v323 = vadd.f32 %v247, %v322
  %324 = vmatmul.f32.gmra.mxu0 %v281
  %v325 = vpop.f32.mrf.mxu0
  %v326 = vadd.f32 %v252, %v325
  %327 = vmatmul.f32.gmra.mxu0 %v284
  %v328 = vpop.f32.mrf.mxu0
  %v329 = vadd.f32 %v257, %v328
  %330 = vdwg.mxu0
  %331 = vmatpush.msra.mxu0 0.0
  %332 = vmatpush.msra.mxu0 0.0
  %333 = vmatpush.msra.mxu0 0.0
  %334 = vmatpush.msra.mxu0 0.0
  %335 = vmatpush.msra.mxu0 0.0
  %336 = vmatpush.msra.mxu0 0.0
  %337 = vmatpush.msra.mxu0 0.0
  %338 = vmatpush.msra.mxu0 0.0
  %339 = vmatpush.msra.mxu0 0.0
  %340 = vmatpush.msra.mxu0 0.0
  %341 = vmatpush.msra.mxu0 0.0
  %342 = vmatpush.msra.mxu0 0.0
  %343 = vmatpush.msra.mxu0 0.0
  %344 = vmatpush.msra.mxu0 0.0
  %345 = vmatpush.msra.mxu0 0.0
  %346 = vmatpush.msra.mxu0 %v288
  %347 = vmatmul.f32.gmra.mxu0 %v263
  %v348 = vpop.f32.mrf.mxu0
  %v349 = vadd.f32 %v222, %v348
  %350 = vmatmul.f32.gmra.mxu0 %v266
  %v351 = vpop.f32.mrf.mxu0
  %v352 = vadd.f32 %v227, %v351
  %353 = vmatmul.f32.gmra.mxu0 %v269
  %v354 = vpop.f32.mrf.mxu0
  %v355 = vadd.f32 %v232, %v354
  %356 = vmatmul.f32.gmra.mxu0 %v272
  %v357 = vpop.f32.mrf.mxu0
  %v358 = vadd.f32 %v237, %v357
  %359 = vmatmul.f32.gmra.mxu0 %v275
  %v360 = vpop.f32.mrf.mxu0
  %v361 = vadd.f32 %v242, %v360
  %362 = vmatmul.f32.gmra.mxu0 %v278
  %v363 = vpop.f32.mrf.mxu0
  %v364 = vadd.f32 %v247, %v363
  %365 = vmatmul.f32.gmra.mxu0 %v281
  %v366 = vpop.f32.mrf.mxu0
  %v367 = vadd.f32 %v252, %v366
  %368 = vmatmul.f32.gmra.mxu0 %v284
  %v369 = vpop.f32.mrf.mxu0
  %v370 = vadd.f32 %v257, %v369
  %371 = vdwg.mxu0
  %372 = vst [vmem:[%s3 + $0x80] sm:$0xff] %v308
  %373 = vst [vmem:[%s3 + $0x88] sm:$0xff] %v349
  %374 = vst [vmem:[%s3 + $0x90] sm:$0xff] %v311
  %375 = vst [vmem:[%s3 + $0x98] sm:$0xff] %v352
  %376 = vst [vmem:[%s3 + $0xa0] sm:$0xff] %v314
  %377 = vst [vmem:[%s3 + $0xa8] sm:$0xff] %v355
  %378 = vst [vmem:[%s3 + $0xb0] sm:$0xff] %v317
  %379 = vst [vmem:[%s3 + $0xb8] sm:$0xff] %v358
  %380 = vst [vmem:[%s3 + $0xc0] sm:$0xff] %v320
  %381 = vst [vmem:[%s3 + $0xc8] sm:$0xff] %v361
  %382 = vst [vmem:[%s3 + $0xd0] sm:$0xff] %v323
  %383 = vst [vmem:[%s3 + $0xd8] sm:$0xff] %v364
  %384 = vst [vmem:[%s3 + $0xe0] sm:$0xff] %v326
  %385 = vst [vmem:[%s3 + $0xe8] sm:$0xff] %v367
  %386 = vst [vmem:[%s3 + $0xf0] sm:$0xff] %v329
  %387 = vst [vmem:[%s3 + $0xf8] sm:$0xff] %v370
  %v388 = vld [vmem:[%s1 + $0x80] sm:$0xff]
  %v389 = vld [vmem:[%s1 + $0x88] sm:$0xff]
  %v390 = vld [vmem:[%s1 + $0x90] sm:$0xff]
  %v391 = vld [vmem:[%s1 + $0x98] sm:$0xff]
  %v392 = vld [vmem:[%s1 + $0xa0] sm:$0xff]
  %v393 = vld [vmem:[%s1 + $0xa8] sm:$0xff]
  %v394 = vld [vmem:[%s1 + $0xb0] sm:$0xff]
  %v395 = vld [vmem:[%s1 + $0xb8] sm:$0xff]
  %v396 = vld [vmem:[%s2 + $0x80] sm:$0xff]
  %v397 = vld [vmem:[%s2 + $0x88] sm:$0xff]
  %v398 = vld [vmem:[%s2 + $0x90] sm:$0xff]
  %v399 = vld [vmem:[%s2 + $0x98] sm:$0xff]
  %v400 = vld [vmem:[%s2 + $0xa0] sm:$0xff]
  %v401 = vld [vmem:[%s2 + $0xa8] sm:$0xff]
  %v402 = vld [vmem:[%s2 + $0xb0] sm:$0xff]
  %v403 = vld [vmem:[%s2 + $0xb8] sm:$0xff]
  %405 = vset.pattern.permute.xlu0 0
  %406 = vperm.xlu0 %405, %v396
  %v407 = vpop.permute.xlu0 %406
  %410 = vset.pattern.permute.xlu0 0
  %411 = vperm.xlu0 %410, %v397
  %v412 = vpop.permute.xlu0 %411
  %415 = vset.pattern.permute.xlu0 0
  %416 = vperm.xlu0 %415, %v398
  %v417 = vpop.permute.xlu0 %416
  %420 = vset.pattern.permute.xlu0 0
  %421 = vperm.xlu0 %420, %v399
  %v422 = vpop.permute.xlu0 %421
  %425 = vset.pattern.permute.xlu0 0
  %426 = vperm.xlu0 %425, %v400
  %v427 = vpop.permute.xlu0 %426
  %430 = vset.pattern.permute.xlu0 0
  %431 = vperm.xlu0 %430, %v401
  %v432 = vpop.permute.xlu0 %431
  %435 = vset.pattern.permute.xlu0 0
  %436 = vperm.xlu0 %435, %v402
  %v437 = vpop.permute.xlu0 %436
  %440 = vset.pattern.permute.xlu0 0
  %441 = vperm.xlu0 %440, %v403
  %v442 = vpop.permute.xlu0 %441
  %444 = vst [vmem:[#allocation1] ss:$2 sm:$0xff] %v14
  %v445 = vld.sshfl [vmem:[#allocation1] sm:$0xff pattern:$0x75316420]
  %v446 = vld.sshfl [vmem:[#allocation1 + $0x8] sm:$0xff pattern:$0x75316420]
  %v448 = vsel %vm75, %v388, 0
  %v451 = vsel %vm75, %v389, 0
  %v454 = vsel %vm75, %v390, 0
  %v457 = vsel %vm75, %v391, 0
  %v460 = vsel %vm75, %v392, 0
  %v463 = vsel %vm75, %v393, 0
  %v466 = vsel %vm75, %v394, 0
  %v469 = vsel %vm75, %v395, 0
  %v471 = vsel %vm100, %v445, 0
  %v473 = vsel %vm100, %v446, 0
  %475 = vmatpush.msra.mxu0 0.0
  %476 = vmatpush.msra.mxu0 0.0
  %477 = vmatpush.msra.mxu0 0.0
  %478 = vmatpush.msra.mxu0 0.0
  %479 = vmatpush.msra.mxu0 0.0
  %480 = vmatpush.msra.mxu0 0.0
  %481 = vmatpush.msra.mxu0 0.0
  %482 = vmatpush.msra.mxu0 0.0
  %483 = vmatpush.msra.mxu0 0.0
  %484 = vmatpush.msra.mxu0 0.0
  %485 = vmatpush.msra.mxu0 0.0
  %486 = vmatpush.msra.mxu0 0.0
  %487 = vmatpush.msra.mxu0 0.0
  %488 = vmatpush.msra.mxu0 0.0
  %489 = vmatpush.msra.mxu0 0.0
  %490 = vmatpush.msra.mxu0 %v471
  %491 = vmatmul.f32.gmra.mxu0 %v448
  %v492 = vpop.f32.mrf.mxu0
  %v493 = vadd.f32 %v407, %v492
  %494 = vmatmul.f32.gmra.mxu0 %v451
  %v495 = vpop.f32.mrf.mxu0
  %v496 = vadd.f32 %v412, %v495
  %497 = vmatmul.f32.gmra.mxu0 %v454
  %v498 = vpop.f32.mrf.mxu0
  %v499 = vadd.f32 %v417, %v498
  %500 = vmatmul.f32.gmra.mxu0 %v457
  %v501 = vpop.f32.mrf.mxu0
  %v502 = vadd.f32 %v422, %v501
  %503 = vmatmul.f32.gmra.mxu0 %v460
  %v504 = vpop.f32.mrf.mxu0
  %v505 = vadd.f32 %v427, %v504
  %506 = vmatmul.f32.gmra.mxu0 %v463
  %v507 = vpop.f32.mrf.mxu0
  %v508 = vadd.f32 %v432, %v507
  %509 = vmatmul.f32.gmra.mxu0 %v466
  %v510 = vpop.f32.mrf.mxu0
  %v511 = vadd.f32 %v437, %v510
  %512 = vmatmul.f32.gmra.mxu0 %v469
  %v513 = vpop.f32.mrf.mxu0
  %v514 = vadd.f32 %v442, %v513
  %515 = vdwg.mxu0
  %516 = vmatpush.msra.mxu0 0.0
  %517 = vmatpush.msra.mxu0 0.0
  %518 = vmatpush.msra.mxu0 0.0
  %519 = vmatpush.msra.mxu0 0.0
  %520 = vmatpush.msra.mxu0 0.0
  %521 = vmatpush.msra.mxu0 0.0
  %522 = vmatpush.msra.mxu0 0.0
  %523 = vmatpush.msra.mxu0 0.0
  %524 = vmatpush.msra.mxu0 0.0
  %525 = vmatpush.msra.mxu0 0.0
  %526 = vmatpush.msra.mxu0 0.0
  %527 = vmatpush.msra.mxu0 0.0
  %528 = vmatpush.msra.mxu0 0.0
  %529 = vmatpush.msra.mxu0 0.0
  %530 = vmatpush.msra.mxu0 0.0
  %531 = vmatpush.msra.mxu0 %v473
  %532 = vmatmul.f32.gmra.mxu0 %v448
  %v533 = vpop.f32.mrf.mxu0
  %v534 = vadd.f32 %v407, %v533
  %535 = vmatmul.f32.gmra.mxu0 %v451
  %v536 = vpop.f32.mrf.mxu0
  %v537 = vadd.f32 %v412, %v536
  %538 = vmatmul.f32.gmra.mxu0 %v454
  %v539 = vpop.f32.mrf.mxu0
  %v540 = vadd.f32 %v417, %v539
  %541 = vmatmul.f32.gmra.mxu0 %v457
  %v542 = vpop.f32.mrf.mxu0
  %v543 = vadd.f32 %v422, %v542
  %544 = vmatmul.f32.gmra.mxu0 %v460
  %v545 = vpop.f32.mrf.mxu0
  %v546 = vadd.f32 %v427, %v545
  %547 = vmatmul.f32.gmra.mxu0 %v463
  %v548 = vpop.f32.mrf.mxu0
  %v549 = vadd.f32 %v432, %v548
  %550 = vmatmul.f32.gmra.mxu0 %v466
  %v551 = vpop.f32.mrf.mxu0
  %v552 = vadd.f32 %v437, %v551
  %553 = vmatmul.f32.gmra.mxu0 %v469
  %v554 = vpop.f32.mrf.mxu0
  %v555 = vadd.f32 %v442, %v554
  %556 = vdwg.mxu0
  %557 = vst [vmem:[%s3 + $0x100] sm:$0xff] %v493
  %558 = vst [vmem:[%s3 + $0x108] sm:$0xff] %v534
  %559 = vst [vmem:[%s3 + $0x110] sm:$0xff] %v496
  %560 = vst [vmem:[%s3 + $0x118] sm:$0xff] %v537
  %561 = vst [vmem:[%s3 + $0x120] sm:$0xff] %v499
  %562 = vst [vmem:[%s3 + $0x128] sm:$0xff] %v540
  %563 = vst [vmem:[%s3 + $0x130] sm:$0xff] %v502
  %564 = vst [vmem:[%s3 + $0x138] sm:$0xff] %v543
  %565 = vst [vmem:[%s3 + $0x140] sm:$0xff] %v505
  %566 = vst [vmem:[%s3 + $0x148] sm:$0xff] %v546
  %567 = vst [vmem:[%s3 + $0x150] sm:$0xff] %v508
  %568 = vst [vmem:[%s3 + $0x158] sm:$0xff] %v549
  %569 = vst [vmem:[%s3 + $0x160] sm:$0xff] %v511
  %570 = vst [vmem:[%s3 + $0x168] sm:$0xff] %v552
  %571 = vst [vmem:[%s3 + $0x170] sm:$0xff] %v514
  %572 = vst [vmem:[%s3 + $0x178] sm:$0xff] %v555
  %v573 = vld [vmem:[%s1 + $0xc0] sm:$0xff]
  %v574 = vld [vmem:[%s1 + $0xc8] sm:$0xff]
  %v575 = vld [vmem:[%s1 + $0xd0] sm:$0xff]
  %v576 = vld [vmem:[%s1 + $0xd8] sm:$0xff]
  %v577 = vld [vmem:[%s1 + $0xe0] sm:$0xff]
  %v578 = vld [vmem:[%s1 + $0xe8] sm:$0xff]
  %v579 = vld [vmem:[%s1 + $0xf0] sm:$0xff]
  %v580 = vld [vmem:[%s1 + $0xf8] sm:$0xff]
  %v581 = vld [vmem:[%s2 + $0xc0] sm:$0xff]
  %v582 = vld [vmem:[%s2 + $0xc8] sm:$0xff]
  %v583 = vld [vmem:[%s2 + $0xd0] sm:$0xff]
  %v584 = vld [vmem:[%s2 + $0xd8] sm:$0xff]
  %v585 = vld [vmem:[%s2 + $0xe0] sm:$0xff]
  %v586 = vld [vmem:[%s2 + $0xe8] sm:$0xff]
  %v587 = vld [vmem:[%s2 + $0xf0] sm:$0xff]
  %v588 = vld [vmem:[%s2 + $0xf8] sm:$0xff]
  %590 = vset.pattern.permute.xlu0 0
  %591 = vperm.xlu0 %590, %v581
  %v592 = vpop.permute.xlu0 %591
  %595 = vset.pattern.permute.xlu0 0
  %596 = vperm.xlu0 %595, %v582
  %v597 = vpop.permute.xlu0 %596
  %600 = vset.pattern.permute.xlu0 0
  %601 = vperm.xlu0 %600, %v583
  %v602 = vpop.permute.xlu0 %601
  %605 = vset.pattern.permute.xlu0 0
  %606 = vperm.xlu0 %605, %v584
  %v607 = vpop.permute.xlu0 %606
  %610 = vset.pattern.permute.xlu0 0
  %611 = vperm.xlu0 %610, %v585
  %v612 = vpop.permute.xlu0 %611
  %615 = vset.pattern.permute.xlu0 0
  %616 = vperm.xlu0 %615, %v586
  %v617 = vpop.permute.xlu0 %616
  %620 = vset.pattern.permute.xlu0 0
  %621 = vperm.xlu0 %620, %v587
  %v622 = vpop.permute.xlu0 %621
  %625 = vset.pattern.permute.xlu0 0
  %626 = vperm.xlu0 %625, %v588
  %v627 = vpop.permute.xlu0 %626
  %629 = vst [vmem:[#allocation1] ss:$2 sm:$0xff] %v14
  %v630 = vld.sshfl [vmem:[#allocation1] sm:$0xff pattern:$0x75316420]
  %v631 = vld.sshfl [vmem:[#allocation1 + $0x8] sm:$0xff pattern:$0x75316420]
  %v633 = vsel %vm75, %v573, 0
  %v636 = vsel %vm75, %v574, 0
  %v639 = vsel %vm75, %v575, 0
  %v642 = vsel %vm75, %v576, 0
  %v645 = vsel %vm75, %v577, 0
  %v648 = vsel %vm75, %v578, 0
  %v651 = vsel %vm75, %v579, 0
  %v654 = vsel %vm75, %v580, 0
  %v656 = vsel %vm100, %v630, 0
  %v658 = vsel %vm100, %v631, 0
  %660 = vmatpush.msra.mxu0 0.0
  %661 = vmatpush.msra.mxu0 0.0
  %662 = vmatpush.msra.mxu0 0.0
  %663 = vmatpush.msra.mxu0 0.0
  %664 = vmatpush.msra.mxu0 0.0
  %665 = vmatpush.msra.mxu0 0.0
  %666 = vmatpush.msra.mxu0 0.0
  %667 = vmatpush.msra.mxu0 0.0
  %668 = vmatpush.msra.mxu0 0.0
  %669 = vmatpush.msra.mxu0 0.0
  %670 = vmatpush.msra.mxu0 0.0
  %671 = vmatpush.msra.mxu0 0.0
  %672 = vmatpush.msra.mxu0 0.0
  %673 = vmatpush.msra.mxu0 0.0
  %674 = vmatpush.msra.mxu0 0.0
  %675 = vmatpush.msra.mxu0 %v656
  %676 = vmatmul.f32.gmra.mxu0 %v633
  %v677 = vpop.f32.mrf.mxu0
  %v678 = vadd.f32 %v592, %v677
  %679 = vmatmul.f32.gmra.mxu0 %v636
  %v680 = vpop.f32.mrf.mxu0
  %v681 = vadd.f32 %v597, %v680
  %682 = vmatmul.f32.gmra.mxu0 %v639
  %v683 = vpop.f32.mrf.mxu0
  %v684 = vadd.f32 %v602, %v683
  %685 = vmatmul.f32.gmra.mxu0 %v642
  %v686 = vpop.f32.mrf.mxu0
  %v687 = vadd.f32 %v607, %v686
  %688 = vmatmul.f32.gmra.mxu0 %v645
  %v689 = vpop.f32.mrf.mxu0
  %v690 = vadd.f32 %v612, %v689
  %691 = vmatmul.f32.gmra.mxu0 %v648
  %v692 = vpop.f32.mrf.mxu0
  %v693 = vadd.f32 %v617, %v692
  %694 = vmatmul.f32.gmra.mxu0 %v651
  %v695 = vpop.f32.mrf.mxu0
  %v696 = vadd.f32 %v622, %v695
  %697 = vmatmul.f32.gmra.mxu0 %v654
  %v698 = vpop.f32.mrf.mxu0
  %v699 = vadd.f32 %v627, %v698
  %700 = vdwg.mxu0
  %701 = vmatpush.msra.mxu0 0.0
  %702 = vmatpush.msra.mxu0 0.0
  %703 = vmatpush.msra.mxu0 0.0
  %704 = vmatpush.msra.mxu0 0.0
  %705 = vmatpush.msra.mxu0 0.0
  %706 = vmatpush.msra.mxu0 0.0
  %707 = vmatpush.msra.mxu0 0.0
  %708 = vmatpush.msra.mxu0 0.0
  %709 = vmatpush.msra.mxu0 0.0
  %710 = vmatpush.msra.mxu0 0.0
  %711 = vmatpush.msra.mxu0 0.0
  %712 = vmatpush.msra.mxu0 0.0
  %713 = vmatpush.msra.mxu0 0.0
  %714 = vmatpush.msra.mxu0 0.0
  %715 = vmatpush.msra.mxu0 0.0
  %716 = vmatpush.msra.mxu0 %v658
  %717 = vmatmul.f32.gmra.mxu0 %v633
  %v718 = vpop.f32.mrf.mxu0
  %v719 = vadd.f32 %v592, %v718
  %720 = vmatmul.f32.gmra.mxu0 %v636
  %v721 = vpop.f32.mrf.mxu0
  %v722 = vadd.f32 %v597, %v721
  %723 = vmatmul.f32.gmra.mxu0 %v639
  %v724 = vpop.f32.mrf.mxu0
  %v725 = vadd.f32 %v602, %v724
  %726 = vmatmul.f32.gmra.mxu0 %v642
  %v727 = vpop.f32.mrf.mxu0
  %v728 = vadd.f32 %v607, %v727
  %729 = vmatmul.f32.gmra.mxu0 %v645
  %v730 = vpop.f32.mrf.mxu0
  %v731 = vadd.f32 %v612, %v730
  %732 = vmatmul.f32.gmra.mxu0 %v648
  %v733 = vpop.f32.mrf.mxu0
  %v734 = vadd.f32 %v617, %v733
  %735 = vmatmul.f32.gmra.mxu0 %v651
  %v736 = vpop.f32.mrf.mxu0
  %v737 = vadd.f32 %v622, %v736
  %738 = vmatmul.f32.gmra.mxu0 %v654
  %v739 = vpop.f32.mrf.mxu0
  %v740 = vadd.f32 %v627, %v739
  %741 = vdwg.mxu0
  %742 = vst [vmem:[%s3 + $0x180] sm:$0xff] %v678
  %743 = vst [vmem:[%s3 + $0x188] sm:$0xff] %v719
  %744 = vst [vmem:[%s3 + $0x190] sm:$0xff] %v681
  %745 = vst [vmem:[%s3 + $0x198] sm:$0xff] %v722
  %746 = vst [vmem:[%s3 + $0x1a0] sm:$0xff] %v684
  %747 = vst [vmem:[%s3 + $0x1a8] sm:$0xff] %v725
  %748 = vst [vmem:[%s3 + $0x1b0] sm:$0xff] %v687
  %749 = vst [vmem:[%s3 + $0x1b8] sm:$0xff] %v728
  %750 = vst [vmem:[%s3 + $0x1c0] sm:$0xff] %v690
  %751 = vst [vmem:[%s3 + $0x1c8] sm:$0xff] %v731
  %752 = vst [vmem:[%s3 + $0x1d0] sm:$0xff] %v693
  %753 = vst [vmem:[%s3 + $0x1d8] sm:$0xff] %v734
  %754 = vst [vmem:[%s3 + $0x1e0] sm:$0xff] %v696
  %755 = vst [vmem:[%s3 + $0x1e8] sm:$0xff] %v737
  %756 = vst [vmem:[%s3 + $0x1f0] sm:$0xff] %v699
  %757 = vst [vmem:[%s3 + $0x1f8] sm:$0xff] %v740
  %s758 = scalar_lea.vmem %s0, 8
  %v759 = vld [vmem:[%s758] sm:$0xff]
  %v760 = vld [vmem:[%s1] sm:$0xff]
  %v761 = vld [vmem:[%s1 + $0x8] sm:$0xff]
  %v762 = vld [vmem:[%s1 + $0x10] sm:$0xff]
  %v763 = vld [vmem:[%s1 + $0x18] sm:$0xff]
  %v764 = vld [vmem:[%s1 + $0x20] sm:$0xff]
  %v765 = vld [vmem:[%s1 + $0x28] sm:$0xff]
  %v766 = vld [vmem:[%s1 + $0x30] sm:$0xff]
  %v767 = vld [vmem:[%s1 + $0x38] sm:$0xff]
  %v768 = vld [vmem:[%s2] sm:$0xff]
  %v769 = vld [vmem:[%s2 + $0x8] sm:$0xff]
  %v770 = vld [vmem:[%s2 + $0x10] sm:$0xff]
  %v771 = vld [vmem:[%s2 + $0x18] sm:$0xff]
  %v772 = vld [vmem:[%s2 + $0x20] sm:$0xff]
  %v773 = vld [vmem:[%s2 + $0x28] sm:$0xff]
  %v774 = vld [vmem:[%s2 + $0x30] sm:$0xff]
  %v775 = vld [vmem:[%s2 + $0x38] sm:$0xff]
  %777 = vset.pattern.permute.xlu0 0
  %778 = vperm.xlu0 %777, %v768
  %v779 = vpop.permute.xlu0 %778
  %782 = vset.pattern.permute.xlu0 0
  %783 = vperm.xlu0 %782, %v769
  %v784 = vpop.permute.xlu0 %783
  %787 = vset.pattern.permute.xlu0 0
  %788 = vperm.xlu0 %787, %v770
  %v789 = vpop.permute.xlu0 %788
  %792 = vset.pattern.permute.xlu0 0
  %793 = vperm.xlu0 %792, %v771
  %v794 = vpop.permute.xlu0 %793
  %797 = vset.pattern.permute.xlu0 0
  %798 = vperm.xlu0 %797, %v772
  %v799 = vpop.permute.xlu0 %798
  %802 = vset.pattern.permute.xlu0 0
  %803 = vperm.xlu0 %802, %v773
  %v804 = vpop.permute.xlu0 %803
  %807 = vset.pattern.permute.xlu0 0
  %808 = vperm.xlu0 %807, %v774
  %v809 = vpop.permute.xlu0 %808
  %812 = vset.pattern.permute.xlu0 0
  %813 = vperm.xlu0 %812, %v775
  %v814 = vpop.permute.xlu0 %813
  %817 = vst [vmem:[#allocation1] ss:$2 sm:$0xff] %v759
  %v818 = vld.sshfl [vmem:[#allocation1] sm:$0xff pattern:$0x75316420]
  %v819 = vld.sshfl [vmem:[#allocation1 + $0x8] sm:$0xff pattern:$0x75316420]
  %v821 = vsel %vm75, %v760, 0
  %v824 = vsel %vm75, %v761, 0
  %v827 = vsel %vm75, %v762, 0
  %v830 = vsel %vm75, %v763, 0
  %v833 = vsel %vm75, %v764, 0
  %v836 = vsel %vm75, %v765, 0
  %v839 = vsel %vm75, %v766, 0
  %v842 = vsel %vm75, %v767, 0
  %v844 = vsel %vm100, %v818, 0
  %v846 = vsel %vm100, %v819, 0
  %848 = vmatpush.msra.mxu0 0.0
  %849 = vmatpush.msra.mxu0 0.0
  %850 = vmatpush.msra.mxu0 0.0
  %851 = vmatpush.msra.mxu0 0.0
  %852 = vmatpush.msra.mxu0 0.0
  %853 = vmatpush.msra.mxu0 0.0
  %854 = vmatpush.msra.mxu0 0.0
  %855 = vmatpush.msra.mxu0 0.0
  %856 = vmatpush.msra.mxu0 0.0
  %857 = vmatpush.msra.mxu0 0.0
  %858 = vmatpush.msra.mxu0 0.0
  %859 = vmatpush.msra.mxu0 0.0
  %860 = vmatpush.msra.mxu0 0.0
  %861 = vmatpush.msra.mxu0 0.0
  %862 = vmatpush.msra.mxu0 0.0
  %863 = vmatpush.msra.mxu0 %v844
  %864 = vmatmul.f32.gmra.mxu0 %v821
  %v865 = vpop.f32.mrf.mxu0
  %v866 = vadd.f32 %v779, %v865
  %867 = vmatmul.f32.gmra.mxu0 %v824
  %v868 = vpop.f32.mrf.mxu0
  %v869 = vadd.f32 %v784, %v868
  %870 = vmatmul.f32.gmra.mxu0 %v827
  %v871 = vpop.f32.mrf.mxu0
  %v872 = vadd.f32 %v789, %v871
  %873 = vmatmul.f32.gmra.mxu0 %v830
  %v874 = vpop.f32.mrf.mxu0
  %v875 = vadd.f32 %v794, %v874
  %876 = vmatmul.f32.gmra.mxu0 %v833
  %v877 = vpop.f32.mrf.mxu0
  %v878 = vadd.f32 %v799, %v877
  %879 = vmatmul.f32.gmra.mxu0 %v836
  %v880 = vpop.f32.mrf.mxu0
  %v881 = vadd.f32 %v804, %v880
  %882 = vmatmul.f32.gmra.mxu0 %v839
  %v883 = vpop.f32.mrf.mxu0
  %v884 = vadd.f32 %v809, %v883
  %885 = vmatmul.f32.gmra.mxu0 %v842
  %v886 = vpop.f32.mrf.mxu0
  %v887 = vadd.f32 %v814, %v886
  %888 = vdwg.mxu0
  %889 = vmatpush.msra.mxu0 0.0
  %890 = vmatpush.msra.mxu0 0.0
  %891 = vmatpush.msra.mxu0 0.0
  %892 = vmatpush.msra.mxu0 0.0
  %893 = vmatpush.msra.mxu0 0.0
  %894 = vmatpush.msra.mxu0 0.0
  %895 = vmatpush.msra.mxu0 0.0
  %896 = vmatpush.msra.mxu0 0.0
  %897 = vmatpush.msra.mxu0 0.0
  %898 = vmatpush.msra.mxu0 0.0
  %899 = vmatpush.msra.mxu0 0.0
  %900 = vmatpush.msra.mxu0 0.0
  %901 = vmatpush.msra.mxu0 0.0
  %902 = vmatpush.msra.mxu0 0.0
  %903 = vmatpush.msra.mxu0 0.0
  %904 = vmatpush.msra.mxu0 %v846
  %905 = vmatmul.f32.gmra.mxu0 %v821
  %v906 = vpop.f32.mrf.mxu0
  %v907 = vadd.f32 %v779, %v906
  %908 = vmatmul.f32.gmra.mxu0 %v824
  %v909 = vpop.f32.mrf.mxu0
  %v910 = vadd.f32 %v784, %v909
  %911 = vmatmul.f32.gmra.mxu0 %v827
  %v912 = vpop.f32.mrf.mxu0
  %v913 = vadd.f32 %v789, %v912
  %914 = vmatmul.f32.gmra.mxu0 %v830
  %v915 = vpop.f32.mrf.mxu0
  %v916 = vadd.f32 %v794, %v915
  %917 = vmatmul.f32.gmra.mxu0 %v833
  %v918 = vpop.f32.mrf.mxu0
  %v919 = vadd.f32 %v799, %v918
  %920 = vmatmul.f32.gmra.mxu0 %v836
  %v921 = vpop.f32.mrf.mxu0
  %v922 = vadd.f32 %v804, %v921
  %923 = vmatmul.f32.gmra.mxu0 %v839
  %v924 = vpop.f32.mrf.mxu0
  %v925 = vadd.f32 %v809, %v924
  %926 = vmatmul.f32.gmra.mxu0 %v842
  %v927 = vpop.f32.mrf.mxu0
  %v928 = vadd.f32 %v814, %v927
  %929 = vdwg.mxu0
  %s930 = scalar_lea.vmem %s3, 512
  %931 = vst [vmem:[%s930] sm:$0xff] %v866
  %932 = vst [vmem:[%s930 + $0x8] sm:$0xff] %v907
  %933 = vst [vmem:[%s930 + $0x10] sm:$0xff] %v869
  %934 = vst [vmem:[%s930 + $0x18] sm:$0xff] %v910
  %935 = vst [vmem:[%s930 + $0x20] sm:$0xff] %v872
  %936 = vst [vmem:[%s930 + $0x28] sm:$0xff] %v913
  %937 = vst [vmem:[%s930 + $0x30] sm:$0xff] %v875
  %938 = vst [vmem:[%s930 + $0x38] sm:$0xff] %v916
  %939 = vst [vmem:[%s930 + $0x40] sm:$0xff] %v878
  %940 = vst [vmem:[%s930 + $0x48] sm:$0xff] %v919
  %941 = vst [vmem:[%s930 + $0x50] sm:$0xff] %v881
  %942 = vst [vmem:[%s930 + $0x58] sm:$0xff] %v922
  %943 = vst [vmem:[%s930 + $0x60] sm:$0xff] %v884
  %944 = vst [vmem:[%s930 + $0x68] sm:$0xff] %v925
  %945 = vst [vmem:[%s930 + $0x70] sm:$0xff] %v887
  %946 = vst [vmem:[%s930 + $0x78] sm:$0xff] %v928
  %v947 = vld [vmem:[%s1 + $0x40] sm:$0xff]
  %v948 = vld [vmem:[%s1 + $0x48] sm:$0xff]
  %v949 = vld [vmem:[%s1 + $0x50] sm:$0xff]
  %v950 = vld [vmem:[%s1 + $0x58] sm:$0xff]
  %v951 = vld [vmem:[%s1 + $0x60] sm:$0xff]
  %v952 = vld [vmem:[%s1 + $0x68] sm:$0xff]
  %v953 = vld [vmem:[%s1 + $0x70] sm:$0xff]
  %v954 = vld [vmem:[%s1 + $0x78] sm:$0xff]
  %v955 = vld [vmem:[%s2 + $0x40] sm:$0xff]
  %v956 = vld [vmem:[%s2 + $0x48] sm:$0xff]
  %v957 = vld [vmem:[%s2 + $0x50] sm:$0xff]
  %v958 = vld [vmem:[%s2 + $0x58] sm:$0xff]
  %v959 = vld [vmem:[%s2 + $0x60] sm:$0xff]
  %v960 = vld [vmem:[%s2 + $0x68] sm:$0xff]
  %v961 = vld [vmem:[%s2 + $0x70] sm:$0xff]
  %v962 = vld [vmem:[%s2 + $0x78] sm:$0xff]
  %964 = vset.pattern.permute.xlu0 0
  %965 = vperm.xlu0 %964, %v955
  %v966 = vpop.permute.xlu0 %965
  %969 = vset.pattern.permute.xlu0 0
  %970 = vperm.xlu0 %969, %v956
  %v971 = vpop.permute.xlu0 %970
  %974 = vset.pattern.permute.xlu0 0
  %975 = vperm.xlu0 %974, %v957
  %v976 = vpop.permute.xlu0 %975
  %979 = vset.pattern.permute.xlu0 0
  %980 = vperm.xlu0 %979, %v958
  %v981 = vpop.permute.xlu0 %980
  %984 = vset.pattern.permute.xlu0 0
  %985 = vperm.xlu0 %984, %v959
  %v986 = vpop.permute.xlu0 %985
  %989 = vset.pattern.permute.xlu0 0
  %990 = vperm.xlu0 %989, %v960
  %v991 = vpop.permute.xlu0 %990
  %994 = vset.pattern.permute.xlu0 0
  %995 = vperm.xlu0 %994, %v961
  %v996 = vpop.permute.xlu0 %995
  %999 = vset.pattern.permute.xlu0 0
  %1000 = vperm.xlu0 %999, %v962
  %v1001 = vpop.permute.xlu0 %1000
  %1003 = vst [vmem:[#allocation1] ss:$2 sm:$0xff] %v759
  %v1004 = vld.sshfl [vmem:[#allocation1] sm:$0xff pattern:$0x75316420]
  %v1005 = vld.sshfl [vmem:[#allocation1 + $0x8] sm:$0xff pattern:$0x75316420]
  %v1007 = vsel %vm75, %v947, 0
  %v1010 = vsel %vm75, %v948, 0
  %v1013 = vsel %vm75, %v949, 0
  %v1016 = vsel %vm75, %v950, 0
  %v1019 = vsel %vm75, %v951, 0
  %v1022 = vsel %vm75, %v952, 0
  %v1025 = vsel %vm75, %v953, 0
  %v1028 = vsel %vm75, %v954, 0
  %v1030 = vsel %vm100, %v1004, 0
  %v1032 = vsel %vm100, %v1005, 0
  %1034 = vmatpush.msra.mxu0 0.0
  %1035 = vmatpush.msra.mxu0 0.0
  %1036 = vmatpush.msra.mxu0 0.0
  %1037 = vmatpush.msra.mxu0 0.0
  %1038 = vmatpush.msra.mxu0 0.0
  %1039 = vmatpush.msra.mxu0 0.0
  %1040 = vmatpush.msra.mxu0 0.0
  %1041 = vmatpush.msra.mxu0 0.0
  %1042 = vmatpush.msra.mxu0 0.0
  %1043 = vmatpush.msra.mxu0 0.0
  %1044 = vmatpush.msra.mxu0 0.0
  %1045 = vmatpush.msra.mxu0 0.0
  %1046 = vmatpush.msra.mxu0 0.0
  %1047 = vmatpush.msra.mxu0 0.0
  %1048 = vmatpush.msra.mxu0 0.0
  %1049 = vmatpush.msra.mxu0 %v1030
  %1050 = vmatmul.f32.gmra.mxu0 %v1007
  %v1051 = vpop.f32.mrf.mxu0
  %v1052 = vadd.f32 %v966, %v1051
  %1053 = vmatmul.f32.gmra.mxu0 %v1010
  %v1054 = vpop.f32.mrf.mxu0
  %v1055 = vadd.f32 %v971, %v1054
  %1056 = vmatmul.f32.gmra.mxu0 %v1013
  %v1057 = vpop.f32.mrf.mxu0
  %v1058 = vadd.f32 %v976, %v1057
  %1059 = vmatmul.f32.gmra.mxu0 %v1016
  %v1060 = vpop.f32.mrf.mxu0
  %v1061 = vadd.f32 %v981, %v1060
  %1062 = vmatmul.f32.gmra.mxu0 %v1019
  %v1063 = vpop.f32.mrf.mxu0
  %v1064 = vadd.f32 %v986, %v1063
  %1065 = vmatmul.f32.gmra.mxu0 %v1022
  %v1066 = vpop.f32.mrf.mxu0
  %v1067 = vadd.f32 %v991, %v1066
  %1068 = vmatmul.f32.gmra.mxu0 %v1025
  %v1069 = vpop.f32.mrf.mxu0
  %v1070 = vadd.f32 %v996, %v1069
  %1071 = vmatmul.f32.gmra.mxu0 %v1028
  %v1072 = vpop.f32.mrf.mxu0
  %v1073 = vadd.f32 %v1001, %v1072
  %1074 = vdwg.mxu0
  %1075 = vmatpush.msra.mxu0 0.0
  %1076 = vmatpush.msra.mxu0 0.0
  %1077 = vmatpush.msra.mxu0 0.0
  %1078 = vmatpush.msra.mxu0 0.0
  %1079 = vmatpush.msra.mxu0 0.0
  %1080 = vmatpush.msra.mxu0 0.0
  %1081 = vmatpush.msra.mxu0 0.0
  %1082 = vmatpush.msra.mxu0 0.0
  %1083 = vmatpush.msra.mxu0 0.0
  %1084 = vmatpush.msra.mxu0 0.0
  %1085 = vmatpush.msra.mxu0 0.0
  %1086 = vmatpush.msra.mxu0 0.0
  %1087 = vmatpush.msra.mxu0 0.0
  %1088 = vmatpush.msra.mxu0 0.0
  %1089 = vmatpush.msra.mxu0 0.0
  %1090 = vmatpush.msra.mxu0 %v1032
  %1091 = vmatmul.f32.gmra.mxu0 %v1007
  %v1092 = vpop.f32.mrf.mxu0
  %v1093 = vadd.f32 %v966, %v1092
  %1094 = vmatmul.f32.gmra.mxu0 %v1010
  %v1095 = vpop.f32.mrf.mxu0
  %v1096 = vadd.f32 %v971, %v1095
  %1097 = vmatmul.f32.gmra.mxu0 %v1013
  %v1098 = vpop.f32.mrf.mxu0
  %v1099 = vadd.f32 %v976, %v1098
  %1100 = vmatmul.f32.gmra.mxu0 %v1016
  %v1101 = vpop.f32.mrf.mxu0
  %v1102 = vadd.f32 %v981, %v1101
  %1103 = vmatmul.f32.gmra.mxu0 %v1019
  %v1104 = vpop.f32.mrf.mxu0
  %v1105 = vadd.f32 %v986, %v1104
  %1106 = vmatmul.f32.gmra.mxu0 %v1022
  %v1107 = vpop.f32.mrf.mxu0
  %v1108 = vadd.f32 %v991, %v1107
  %1109 = vmatmul.f32.gmra.mxu0 %v1025
  %v1110 = vpop.f32.mrf.mxu0
  %v1111 = vadd.f32 %v996, %v1110
  %1112 = vmatmul.f32.gmra.mxu0 %v1028
  %v1113 = vpop.f32.mrf.mxu0
  %v1114 = vadd.f32 %v1001, %v1113
  %1115 = vdwg.mxu0
  %1116 = vst [vmem:[%s930 + $0x80] sm:$0xff] %v1052
  %1117 = vst [vmem:[%s930 + $0x88] sm:$0xff] %v1093
  %1118 = vst [vmem:[%s930 + $0x90] sm:$0xff] %v1055
  %1119 = vst [vmem:[%s930 + $0x98] sm:$0xff] %v1096
  %1120 = vst [vmem:[%s930 + $0xa0] sm:$0xff] %v1058
  %1121 = vst [vmem:[%s930 + $0xa8] sm:$0xff] %v1099
  %1122 = vst [vmem:[%s930 + $0xb0] sm:$0xff] %v1061
  %1123 = vst [vmem:[%s930 + $0xb8] sm:$0xff] %v1102
  %1124 = vst [vmem:[%s930 + $0xc0] sm:$0xff] %v1064
  %1125 = vst [vmem:[%s930 + $0xc8] sm:$0xff] %v1105
  %1126 = vst [vmem:[%s930 + $0xd0] sm:$0xff] %v1067
  %1127 = vst [vmem:[%s930 + $0xd8] sm:$0xff] %v1108
  %1128 = vst [vmem:[%s930 + $0xe0] sm:$0xff] %v1070
  %1129 = vst [vmem:[%s930 + $0xe8] sm:$0xff] %v1111
  %1130 = vst [vmem:[%s930 + $0xf0] sm:$0xff] %v1073
  %1131 = vst [vmem:[%s930 + $0xf8] sm:$0xff] %v1114
  %v1132 = vld [vmem:[%s1 + $0x80] sm:$0xff]
  %v1133 = vld [vmem:[%s1 + $0x88] sm:$0xff]
  %v1134 = vld [vmem:[%s1 + $0x90] sm:$0xff]
  %v1135 = vld [vmem:[%s1 + $0x98] sm:$0xff]
  %v1136 = vld [vmem:[%s1 + $0xa0] sm:$0xff]
  %v1137 = vld [vmem:[%s1 + $0xa8] sm:$0xff]
  %v1138 = vld [vmem:[%s1 + $0xb0] sm:$0xff]
  %v1139 = vld [vmem:[%s1 + $0xb8] sm:$0xff]
  %v1140 = vld [vmem:[%s2 + $0x80] sm:$0xff]
  %v1141 = vld [vmem:[%s2 + $0x88] sm:$0xff]
  %v1142 = vld [vmem:[%s2 + $0x90] sm:$0xff]
  %v1143 = vld [vmem:[%s2 + $0x98] sm:$0xff]
  %v1144 = vld [vmem:[%s2 + $0xa0] sm:$0xff]
  %v1145 = vld [vmem:[%s2 + $0xa8] sm:$0xff]
  %v1146 = vld [vmem:[%s2 + $0xb0] sm:$0xff]
  %v1147 = vld [vmem:[%s2 + $0xb8] sm:$0xff]
  %1149 = vset.pattern.permute.xlu0 0
  %1150 = vperm.xlu0 %1149, %v1140
  %v1151 = vpop.permute.xlu0 %1150
  %1154 = vset.pattern.permute.xlu0 0
  %1155 = vperm.xlu0 %1154, %v1141
  %v1156 = vpop.permute.xlu0 %1155
  %1159 = vset.pattern.permute.xlu0 0
  %1160 = vperm.xlu0 %1159, %v1142
  %v1161 = vpop.permute.xlu0 %1160
  %1164 = vset.pattern.permute.xlu0 0
  %1165 = vperm.xlu0 %1164, %v1143
  %v1166 = vpop.permute.xlu0 %1165
  %1169 = vset.pattern.permute.xlu0 0
  %1170 = vperm.xlu0 %1169, %v1144
  %v1171 = vpop.permute.xlu0 %1170
  %1174 = vset.pattern.permute.xlu0 0
  %1175 = vperm.xlu0 %1174, %v1145
  %v1176 = vpop.permute.xlu0 %1175
  %1179 = vset.pattern.permute.xlu0 0
  %1180 = vperm.xlu0 %1179, %v1146
  %v1181 = vpop.permute.xlu0 %1180
  %1184 = vset.pattern.permute.xlu0 0
  %1185 = vperm.xlu0 %1184, %v1147
  %v1186 = vpop.permute.xlu0 %1185
  %1188 = vst [vmem:[#allocation1] ss:$2 sm:$0xff] %v759
  %v1189 = vld.sshfl [vmem:[#allocation1] sm:$0xff pattern:$0x75316420]
  %v1190 = vld.sshfl [vmem:[#allocation1 + $0x8] sm:$0xff pattern:$0x75316420]
  %v1192 = vsel %vm75, %v1132, 0
  %v1195 = vsel %vm75, %v1133, 0
  %v1198 = vsel %vm75, %v1134, 0
  %v1201 = vsel %vm75, %v1135, 0
  %v1204 = vsel %vm75, %v1136, 0
  %v1207 = vsel %vm75, %v1137, 0
  %v1210 = vsel %vm75, %v1138, 0
  %v1213 = vsel %vm75, %v1139, 0
  %v1215 = vsel %vm100, %v1189, 0
  %v1217 = vsel %vm100, %v1190, 0
  %1219 = vmatpush.msra.mxu0 0.0
  %1220 = vmatpush.msra.mxu0 0.0
  %1221 = vmatpush.msra.mxu0 0.0
  %1222 = vmatpush.msra.mxu0 0.0
  %1223 = vmatpush.msra.mxu0 0.0
  %1224 = vmatpush.msra.mxu0 0.0
  %1225 = vmatpush.msra.mxu0 0.0
  %1226 = vmatpush.msra.mxu0 0.0
  %1227 = vmatpush.msra.mxu0 0.0
  %1228 = vmatpush.msra.mxu0 0.0
  %1229 = vmatpush.msra.mxu0 0.0
  %1230 = vmatpush.msra.mxu0 0.0
  %1231 = vmatpush.msra.mxu0 0.0
  %1232 = vmatpush.msra.mxu0 0.0
  %1233 = vmatpush.msra.mxu0 0.0
  %1234 = vmatpush.msra.mxu0 %v1215
  %1235 = vmatmul.f32.gmra.mxu0 %v1192
  %v1236 = vpop.f32.mrf.mxu0
  %v1237 = vadd.f32 %v1151, %v1236
  %1238 = vmatmul.f32.gmra.mxu0 %v1195
  %v1239 = vpop.f32.mrf.mxu0
  %v1240 = vadd.f32 %v1156, %v1239
  %1241 = vmatmul.f32.gmra.mxu0 %v1198
  %v1242 = vpop.f32.mrf.mxu0
  %v1243 = vadd.f32 %v1161, %v1242
  %1244 = vmatmul.f32.gmra.mxu0 %v1201
  %v1245 = vpop.f32.mrf.mxu0
  %v1246 = vadd.f32 %v1166, %v1245
  %1247 = vmatmul.f32.gmra.mxu0 %v1204
  %v1248 = vpop.f32.mrf.mxu0
  %v1249 = vadd.f32 %v1171, %v1248
  %1250 = vmatmul.f32.gmra.mxu0 %v1207
  %v1251 = vpop.f32.mrf.mxu0
  %v1252 = vadd.f32 %v1176, %v1251
  %1253 = vmatmul.f32.gmra.mxu0 %v1210
  %v1254 = vpop.f32.mrf.mxu0
  %v1255 = vadd.f32 %v1181, %v1254
  %1256 = vmatmul.f32.gmra.mxu0 %v1213
  %v1257 = vpop.f32.mrf.mxu0
  %v1258 = vadd.f32 %v1186, %v1257
  %1259 = vdwg.mxu0
  %1260 = vmatpush.msra.mxu0 0.0
  %1261 = vmatpush.msra.mxu0 0.0
  %1262 = vmatpush.msra.mxu0 0.0
  %1263 = vmatpush.msra.mxu0 0.0
  %1264 = vmatpush.msra.mxu0 0.0
  %1265 = vmatpush.msra.mxu0 0.0
  %1266 = vmatpush.msra.mxu0 0.0
  %1267 = vmatpush.msra.mxu0 0.0
  %1268 = vmatpush.msra.mxu0 0.0
  %1269 = vmatpush.msra.mxu0 0.0
  %1270 = vmatpush.msra.mxu0 0.0
  %1271 = vmatpush.msra.mxu0 0.0
  %1272 = vmatpush.msra.mxu0 0.0
  %1273 = vmatpush.msra.mxu0 0.0
  %1274 = vmatpush.msra.mxu0 0.0
  %1275 = vmatpush.msra.mxu0 %v1217
  %1276 = vmatmul.f32.gmra.mxu0 %v1192
  %v1277 = vpop.f32.mrf.mxu0
  %v1278 = vadd.f32 %v1151, %v1277
  %1279 = vmatmul.f32.gmra.mxu0 %v1195
  %v1280 = vpop.f32.mrf.mxu0
  %v1281 = vadd.f32 %v1156, %v1280
  %1282 = vmatmul.f32.gmra.mxu0 %v1198
  %v1283 = vpop.f32.mrf.mxu0
  %v1284 = vadd.f32 %v1161, %v1283
  %1285 = vmatmul.f32.gmra.mxu0 %v1201
  %v1286 = vpop.f32.mrf.mxu0
  %v1287 = vadd.f32 %v1166, %v1286
  %1288 = vmatmul.f32.gmra.mxu0 %v1204
  %v1289 = vpop.f32.mrf.mxu0
  %v1290 = vadd.f32 %v1171, %v1289
  %1291 = vmatmul.f32.gmra.mxu0 %v1207
  %v1292 = vpop.f32.mrf.mxu0
  %v1293 = vadd.f32 %v1176, %v1292
  %1294 = vmatmul.f32.gmra.mxu0 %v1210
  %v1295 = vpop.f32.mrf.mxu0
  %v1296 = vadd.f32 %v1181, %v1295
  %1297 = vmatmul.f32.gmra.mxu0 %v1213
  %v1298 = vpop.f32.mrf.mxu0
  %v1299 = vadd.f32 %v1186, %v1298
  %1300 = vdwg.mxu0
  %1301 = vst [vmem:[%s930 + $0x100] sm:$0xff] %v1237
  %1302 = vst [vmem:[%s930 + $0x108] sm:$0xff] %v1278
  %1303 = vst [vmem:[%s930 + $0x110] sm:$0xff] %v1240
  %1304 = vst [vmem:[%s930 + $0x118] sm:$0xff] %v1281
  %1305 = vst [vmem:[%s930 + $0x120] sm:$0xff] %v1243
  %1306 = vst [vmem:[%s930 + $0x128] sm:$0xff] %v1284
  %1307 = vst [vmem:[%s930 + $0x130] sm:$0xff] %v1246
  %1308 = vst [vmem:[%s930 + $0x138] sm:$0xff] %v1287
  %1309 = vst [vmem:[%s930 + $0x140] sm:$0xff] %v1249
  %1310 = vst [vmem:[%s930 + $0x148] sm:$0xff] %v1290
  %1311 = vst [vmem:[%s930 + $0x150] sm:$0xff] %v1252
  %1312 = vst [vmem:[%s930 + $0x158] sm:$0xff] %v1293
  %1313 = vst [vmem:[%s930 + $0x160] sm:$0xff] %v1255
  %1314 = vst [vmem:[%s930 + $0x168] sm:$0xff] %v1296
  %1315 = vst [vmem:[%s930 + $0x170] sm:$0xff] %v1258
  %1316 = vst [vmem:[%s930 + $0x178] sm:$0xff] %v1299
  %v1317 = vld [vmem:[%s1 + $0xc0] sm:$0xff]
  %v1318 = vld [vmem:[%s1 + $0xc8] sm:$0xff]
  %v1319 = vld [vmem:[%s1 + $0xd0] sm:$0xff]
  %v1320 = vld [vmem:[%s1 + $0xd8] sm:$0xff]
  %v1321 = vld [vmem:[%s1 + $0xe0] sm:$0xff]
  %v1322 = vld [vmem:[%s1 + $0xe8] sm:$0xff]
  %v1323 = vld [vmem:[%s1 + $0xf0] sm:$0xff]
  %v1324 = vld [vmem:[%s1 + $0xf8] sm:$0xff]
  %v1325 = vld [vmem:[%s2 + $0xc0] sm:$0xff]
  %v1326 = vld [vmem:[%s2 + $0xc8] sm:$0xff]
  %v1327 = vld [vmem:[%s2 + $0xd0] sm:$0xff]
  %v1328 = vld [vmem:[%s2 + $0xd8] sm:$0xff]
  %v1329 = vld [vmem:[%s2 + $0xe0] sm:$0xff]
  %v1330 = vld [vmem:[%s2 + $0xe8] sm:$0xff]
  %v1331 = vld [vmem:[%s2 + $0xf0] sm:$0xff]
  %v1332 = vld [vmem:[%s2 + $0xf8] sm:$0xff]
  %1334 = vset.pattern.permute.xlu0 0
  %1335 = vperm.xlu0 %1334, %v1325
  %v1336 = vpop.permute.xlu0 %1335
  %1339 = vset.pattern.permute.xlu0 0
  %1340 = vperm.xlu0 %1339, %v1326
  %v1341 = vpop.permute.xlu0 %1340
  %1344 = vset.pattern.permute.xlu0 0
  %1345 = vperm.xlu0 %1344, %v1327
  %v1346 = vpop.permute.xlu0 %1345
  %1349 = vset.pattern.permute.xlu0 0
  %1350 = vperm.xlu0 %1349, %v1328
  %v1351 = vpop.permute.xlu0 %1350
  %1354 = vset.pattern.permute.xlu0 0
  %1355 = vperm.xlu0 %1354, %v1329
  %v1356 = vpop.permute.xlu0 %1355
  %1359 = vset.pattern.permute.xlu0 0
  %1360 = vperm.xlu0 %1359, %v1330
  %v1361 = vpop.permute.xlu0 %1360
  %1364 = vset.pattern.permute.xlu0 0
  %1365 = vperm.xlu0 %1364, %v1331
  %v1366 = vpop.permute.xlu0 %1365
  %1369 = vset.pattern.permute.xlu0 0
  %1370 = vperm.xlu0 %1369, %v1332
  %v1371 = vpop.permute.xlu0 %1370
  %1373 = vst [vmem:[#allocation1] ss:$2 sm:$0xff] %v759
  %v1374 = vld.sshfl [vmem:[#allocation1] sm:$0xff pattern:$0x75316420]
  %v1375 = vld.sshfl [vmem:[#allocation1 + $0x8] sm:$0xff pattern:$0x75316420]
  %v1377 = vsel %vm75, %v1317, 0
  %v1380 = vsel %vm75, %v1318, 0
  %v1383 = vsel %vm75, %v1319, 0
  %v1386 = vsel %vm75, %v1320, 0
  %v1389 = vsel %vm75, %v1321, 0
  %v1392 = vsel %vm75, %v1322, 0
  %v1395 = vsel %vm75, %v1323, 0
  %v1398 = vsel %vm75, %v1324, 0
  %v1400 = vsel %vm100, %v1374, 0
  %v1402 = vsel %vm100, %v1375, 0
  %1404 = vmatpush.msra.mxu0 0.0
  %1405 = vmatpush.msra.mxu0 0.0
  %1406 = vmatpush.msra.mxu0 0.0
  %1407 = vmatpush.msra.mxu0 0.0
  %1408 = vmatpush.msra.mxu0 0.0
  %1409 = vmatpush.msra.mxu0 0.0
  %1410 = vmatpush.msra.mxu0 0.0
  %1411 = vmatpush.msra.mxu0 0.0
  %1412 = vmatpush.msra.mxu0 0.0
  %1413 = vmatpush.msra.mxu0 0.0
  %1414 = vmatpush.msra.mxu0 0.0
  %1415 = vmatpush.msra.mxu0 0.0
  %1416 = vmatpush.msra.mxu0 0.0
  %1417 = vmatpush.msra.mxu0 0.0
  %1418 = vmatpush.msra.mxu0 0.0
  %1419 = vmatpush.msra.mxu0 %v1400
  %1420 = vmatmul.f32.gmra.mxu0 %v1377
  %v1421 = vpop.f32.mrf.mxu0
  %v1422 = vadd.f32 %v1336, %v1421
  %1423 = vmatmul.f32.gmra.mxu0 %v1380
  %v1424 = vpop.f32.mrf.mxu0
  %v1425 = vadd.f32 %v1341, %v1424
  %1426 = vmatmul.f32.gmra.mxu0 %v1383
  %v1427 = vpop.f32.mrf.mxu0
  %v1428 = vadd.f32 %v1346, %v1427
  %1429 = vmatmul.f32.gmra.mxu0 %v1386
  %v1430 = vpop.f32.mrf.mxu0
  %v1431 = vadd.f32 %v1351, %v1430
  %1432 = vmatmul.f32.gmra.mxu0 %v1389
  %v1433 = vpop.f32.mrf.mxu0
  %v1434 = vadd.f32 %v1356, %v1433
  %1435 = vmatmul.f32.gmra.mxu0 %v1392
  %v1436 = vpop.f32.mrf.mxu0
  %v1437 = vadd.f32 %v1361, %v1436
  %1438 = vmatmul.f32.gmra.mxu0 %v1395
  %v1439 = vpop.f32.mrf.mxu0
  %v1440 = vadd.f32 %v1366, %v1439
  %1441 = vmatmul.f32.gmra.mxu0 %v1398
  %v1442 = vpop.f32.mrf.mxu0
  %v1443 = vadd.f32 %v1371, %v1442
  %1444 = vdwg.mxu0
  %1445 = vmatpush.msra.mxu0 0.0
  %1446 = vmatpush.msra.mxu0 0.0
  %1447 = vmatpush.msra.mxu0 0.0
  %1448 = vmatpush.msra.mxu0 0.0
  %1449 = vmatpush.msra.mxu0 0.0
  %1450 = vmatpush.msra.mxu0 0.0
  %1451 = vmatpush.msra.mxu0 0.0
  %1452 = vmatpush.msra.mxu0 0.0
  %1453 = vmatpush.msra.mxu0 0.0
  %1454 = vmatpush.msra.mxu0 0.0
  %1455 = vmatpush.msra.mxu0 0.0
  %1456 = vmatpush.msra.mxu0 0.0
  %1457 = vmatpush.msra.mxu0 0.0
  %1458 = vmatpush.msra.mxu0 0.0
  %1459 = vmatpush.msra.mxu0 0.0
  %1460 = vmatpush.msra.mxu0 %v1402
  %1461 = vmatmul.f32.gmra.mxu0 %v1377
  %v1462 = vpop.f32.mrf.mxu0
  %v1463 = vadd.f32 %v1336, %v1462
  %1464 = vmatmul.f32.gmra.mxu0 %v1380
  %v1465 = vpop.f32.mrf.mxu0
  %v1466 = vadd.f32 %v1341, %v1465
  %1467 = vmatmul.f32.gmra.mxu0 %v1383
  %v1468 = vpop.f32.mrf.mxu0
  %v1469 = vadd.f32 %v1346, %v1468
  %1470 = vmatmul.f32.gmra.mxu0 %v1386
  %v1471 = vpop.f32.mrf.mxu0
  %v1472 = vadd.f32 %v1351, %v1471
  %1473 = vmatmul.f32.gmra.mxu0 %v1389
  %v1474 = vpop.f32.mrf.mxu0
  %v1475 = vadd.f32 %v1356, %v1474
  %1476 = vmatmul.f32.gmra.mxu0 %v1392
  %v1477 = vpop.f32.mrf.mxu0
  %v1478 = vadd.f32 %v1361, %v1477
  %1479 = vmatmul.f32.gmra.mxu0 %v1395
  %v1480 = vpop.f32.mrf.mxu0
  %v1481 = vadd.f32 %v1366, %v1480
  %1482 = vmatmul.f32.gmra.mxu0 %v1398
  %v1483 = vpop.f32.mrf.mxu0
  %v1484 = vadd.f32 %v1371, %v1483
  %1485 = vdwg.mxu0
  %1486 = vst [vmem:[%s930 + $0x180] sm:$0xff] %v1422
  %1487 = vst [vmem:[%s930 + $0x188] sm:$0xff] %v1463
  %1488 = vst [vmem:[%s930 + $0x190] sm:$0xff] %v1425
  %1489 = vst [vmem:[%s930 + $0x198] sm:$0xff] %v1466
  %1490 = vst [vmem:[%s930 + $0x1a0] sm:$0xff] %v1428
  %1491 = vst [vmem:[%s930 + $0x1a8] sm:$0xff] %v1469
  %1492 = vst [vmem:[%s930 + $0x1b0] sm:$0xff] %v1431
  %1493 = vst [vmem:[%s930 + $0x1b8] sm:$0xff] %v1472
  %1494 = vst [vmem:[%s930 + $0x1c0] sm:$0xff] %v1434
  %1495 = vst [vmem:[%s930 + $0x1c8] sm:$0xff] %v1475
  %1496 = vst [vmem:[%s930 + $0x1d0] sm:$0xff] %v1437
  %1497 = vst [vmem:[%s930 + $0x1d8] sm:$0xff] %v1478
  %1498 = vst [vmem:[%s930 + $0x1e0] sm:$0xff] %v1440
  %1499 = vst [vmem:[%s930 + $0x1e8] sm:$0xff] %v1481
  %1500 = vst [vmem:[%s930 + $0x1f0] sm:$0xff] %v1443
  %1501 = vst [vmem:[%s930 + $0x1f8] sm:$0xff] %v1484
  // Predicated region
  $region14: #{class_block_forward.1} parent=0 // pred_check
    _
  $region15: #{class_block_forward.1} parent=0 // pred_check_branch
    %1503 = sbr.rel (0) target = $region17
  $region16: #{class_block_forward.1} parent=0 // pred_region
    _
  $region17: #{class_block_forward.1} parent=0 // pred_fallthru
    _
  // Predicated region
  $region18: #{class_block_forward.1} parent=0 // pred_check
    _
  $region19: #{class_block_forward.1} parent=0 // pred_check_branch
    %1505 = sbr.rel (0) target = $region21
  $region20: #{class_block_forward.1} parent=0 // pred_region
    _
  $region21: #{class_block_forward.1} parent=0 // pred_fallthru
    _

</llo_original>
